<compile_context>
chip_gen: v7x
topology: tpu7x:2x2x1
jax: 0.10.0
libtpu: 0.0.40
codegen_flags: <defaults>
</compile_context>

<pallas_src>
import functools

import jax
import jax.numpy as jnp
import numpy as np
from jax.experimental import pallas as pl
from jax.experimental.pallas import tpu as pltpu


# ----------------------------------------------------------------------------
# Pallas kernel: one batch per grid step, all T periods fused.
# ----------------------------------------------------------------------------
def _a3tgcn_batched_kernel(
    x_ref,      # (1, N, T*Fin)   bf16  node-major features, period-major lanes
    h_ref,      # (1, N, Hd)      f32   initial hidden state (shared by all t)
    a_ref,      # (N, N)          bf16  dense GCN-normalized adjacency
    wblk_ref,   # (T*Fin, 3*T*Hd) bf16  folded GCN+gate-linear weights (blockdiag over t)
    bblk_ref,   # (1, 3*T*Hd)     f32   folded gate biases (tiled over t)
    hl_ref,     # (Hd, 2*T*Hd)    bf16  [lz2 | lr2] hidden projections (tiled over t)
    lh2_ref,    # (T*Hd, T*Hd)    bf16  blockdiag(lh2) over t
    pmat_ref,   # (T*Hd, Hd)      bf16  kron(softmax(attention), I_Hd)
    fw_ref,     # (Hd, T)         bf16  final Linear weight (transposed)
    fb_ref,     # (1, T)          f32   final Linear bias
    out_ref,    # (1, N, T)       f32
    *, T: int, Hd: int,
):
    THd = T * Hd
    bf16 = jnp.bfloat16

    X = x_ref[0]                       # (N, T*Fin) bf16
    Hb = h_ref[0]                      # (N, Hd)    f32
    A = a_ref[...]                     # (N, N)     bf16

    # Spatial aggregation for ALL periods at once: (N,N) @ (N, T*Fin).
    AX = jnp.dot(A, X, preferred_element_type=jnp.float32)

    # Folded gate projections for all periods / all three gates in one push.
    G = (
        jnp.dot(AX.astype(bf16), wblk_ref[...], preferred_element_type=jnp.float32)
        + bblk_ref[0]
    )                                   # (N, 3*T*Hd)
    Gz = G[:, 0:THd]
    Gr = G[:, THd:2 * THd]
    Gh = G[:, 2 * THd:3 * THd]

    # Hidden-state projections (H is shared across periods) in one push.
    HL = jnp.dot(Hb.astype(bf16), hl_ref[...], preferred_element_type=jnp.float32)
    Hz = HL[:, 0:THd]
    Hr = HL[:, THd:2 * THd]

    H_wide = jnp.tile(Hb, (1, T))       # (N, T*Hd) f32

    # GRU-style gates, vectorized over all T periods (lane-dense slabs).
    Z = jax.nn.sigmoid(Gz + Hz)
    R = jax.nn.sigmoid(Gr + Hr)
    HR = (H_wide * R).astype(bf16)
    C = jnp.dot(HR, lh2_ref[...], preferred_element_type=jnp.float32)
    H_tilde = jnp.tanh(Gh + C)
    cur = Z * H_wide + (1.0 - Z) * H_tilde          # (N, T*Hd)

    # Attention-weighted reduction over periods as one matmul.
    acc = jnp.dot(cur.astype(bf16), pmat_ref[...], preferred_element_type=jnp.float32)
    acc = jnp.maximum(acc, 0.0)                      # ReLU, (N, Hd)

    # Final Linear(hidden -> periods).
    out_ref[0] = (
        jnp.dot(acc.astype(bf16), fw_ref[...], preferred_element_type=jnp.float32)
        + fb_ref[0]
    )


# ----------------------------------------------------------------------------
# Glue: dense normalized adjacency + parameter init
# ----------------------------------------------------------------------------
def build_norm_adj(edge_index, num_nodes, edge_weight=None):
    """Dense GCN-normalized adjacency D^{-1/2} (A + I) D^{-1/2}."""
    src = edge_index[0]
    dst = edge_index[1]
    w = jnp.ones(src.shape[0], jnp.float32) if edge_weight is None else edge_weight
    A = jnp.zeros((num_nodes, num_nodes), jnp.float32)
    A = A.at[dst, src].add(w)                        # messages src -> dst
    A = A + jnp.eye(num_nodes, dtype=jnp.float32)    # self loops
    deg = jnp.sum(A, axis=1)
    d_inv_sqrt = jnp.where(deg > 0, 1.0 / jnp.sqrt(deg), 0.0)
    return d_inv_sqrt[:, None] * A * d_inv_sqrt[None, :]


def init_params(key, in_channels, hidden, periods):
    ks = jax.random.split(key, 16)
    u = lambda k, shape, s: (jax.random.uniform(k, shape, jnp.float32) - 0.5) * 2.0 * s
    p = {}
    # GCN conv weights for the three gates.
    p["wz"] = u(ks[0], (in_channels, hidden), 0.3)
    p["bz"] = u(ks[1], (1, hidden), 0.1)
    p["wr"] = u(ks[2], (in_channels, hidden), 0.3)
    p["br"] = u(ks[3], (1, hidden), 0.1)
    p["wh"] = u(ks[4], (in_channels, hidden), 0.3)
    p["bh"] = u(ks[5], (1, hidden), 0.1)
    # Gate linears Linear(2H -> H), stored split & transposed:
    # y = cat([conv, H]) @ W.T + b  =  conv @ W1 + H @ W2 + b
    for name, k1, k2, k3 in (("z", 6, 7, 8), ("r", 9, 10, 11), ("h", 12, 13, 14)):
        p[f"l{name}1"] = u(ks[k1], (hidden, hidden), 0.2)
        p[f"l{name}2"] = u(ks[k2], (hidden, hidden), 0.2)
        p[f"l{name}b"] = u(ks[k3], (1, hidden), 0.1)
    # Final Linear(hidden -> periods), stored transposed.
    kf1, kf2, ka = jax.random.split(ks[15], 3)
    p["fw"] = u(kf1, (hidden, periods), 0.2)
    p["fb"] = u(kf2, (1, periods), 0.1)
    # attention parameter ~ U[0, 1)  (torch.nn.init.uniform_)
    p["attention"] = jax.random.uniform(ka, (periods,), jnp.float32)
    return p


# ----------------------------------------------------------------------------
# Forward wrapper (trace-time folding + pallas_call)
# ----------------------------------------------------------------------------
@functools.partial(jax.jit, static_argnames=("hidden",))
def temporal_gnn_forward(X, A_hat, params, hidden, H=None):
    """X: (B, N, Fin, T) float32. Returns (B, N, T) float32."""
    B, N, Fin, T = X.shape
    Hd = hidden
    f32, bf16 = jnp.float32, jnp.bfloat16

    if H is None:
        H = jnp.zeros((B, N, Hd), f32)

    # ---- trace-time weight folding / fusion (tiny; done once per call) ----
    Wz = params["wz"] @ params["lz1"]                    # (Fin, Hd)
    Wr = params["wr"] @ params["lr1"]
    Wh = params["wh"] @ params["lh1"]
    bz = params["bz"] @ params["lz1"] + params["lzb"]    # (1, Hd)
    br = params["br"] @ params["lr1"] + params["lrb"]
    bh = params["bh"] @ params["lh1"] + params["lhb"]

    eyeT = jnp.eye(T, dtype=f32)
    # Blockdiag over periods, gate-major column layout: [Z | R | H], each
    # block period-major with Hd columns per period.
    W_blk = jnp.concatenate(
        [jnp.kron(eyeT, Wz), jnp.kron(eyeT, Wr), jnp.kron(eyeT, Wh)], axis=1
    ).astype(bf16)                                        # (T*Fin, 3*T*Hd)
    b_blk = jnp.concatenate(
        [jnp.tile(bz, (1, T)), jnp.tile(br, (1, T)), jnp.tile(bh, (1, T))], axis=1
    )                                                     # (1, 3*T*Hd) f32
    HL = jnp.concatenate(
        [jnp.tile(params["lz2"], (1, T)), jnp.tile(params["lr2"], (1, T))], axis=1
    ).astype(bf16)                                        # (Hd, 2*T*Hd)
    LH2_blk = jnp.kron(eyeT, params["lh2"]).astype(bf16)  # (T*Hd, T*Hd)

    probs = jax.nn.softmax(params["attention"], axis=0)
    P_mat = jnp.kron(probs[:, None], jnp.eye(Hd, dtype=f32)).astype(bf16)  # (T*Hd, Hd)

    fw = params["fw"].astype(bf16)                        # (Hd, T)
    fb = params["fb"]                                     # (1, T) f32

    # X: (B, N, Fin, T) -> node-major with period-major lanes: (B, N, T*Fin)
    Xn = jnp.transpose(X, (0, 1, 3, 2)).reshape(B, N, T * Fin).astype(bf16)
    A_bf = A_hat.astype(bf16)

    def const_spec(arr):
        nd = arr.ndim
        return pl.BlockSpec(arr.shape, lambda b, _nd=nd: (0,) * _nd)

    in_specs = [
        pl.BlockSpec((1, N, T * Fin), lambda b: (b, 0, 0)),   # X (per batch)
        pl.BlockSpec((1, N, Hd), lambda b: (b, 0, 0)),        # H0 (per batch)
        const_spec(A_bf),
        const_spec(W_blk),
        const_spec(b_blk),
        const_spec(HL),
        const_spec(LH2_blk),
        const_spec(P_mat),
        const_spec(fw),
        const_spec(fb),
    ]
    out_spec = pl.BlockSpec((1, N, T), lambda b: (b, 0, 0))

    kernel = functools.partial(_a3tgcn_batched_kernel, T=T, Hd=Hd)

    out = pl.pallas_call(
        kernel,
        out_shape=jax.ShapeDtypeStruct((B, N, T), f32),
        grid_spec=pltpu.PrefetchScalarGridSpec(
            num_scalar_prefetch=0,
            grid=(B,),
            in_specs=in_specs,
            out_specs=out_spec,
        ),
        compiler_params=pltpu.CompilerParams(
            dimension_semantics=("parallel",),
        ),
    )(Xn, H, A_bf, W_blk, b_blk, HL, LH2_blk, P_mat, fw, fb)
    return out


# ----------------------------------------------------------------------------
# Pure-JAX reference (mirrors the PyTorch forward) for a correctness check.
# ----------------------------------------------------------------------------
def reference_forward(X, A_hat, params, hidden, H=None):
    B, N, Fin, T = X.shape
    if H is None:
        H = jnp.zeros((B, N, hidden), jnp.float32)
    probs = jax.nn.softmax(params["attention"], axis=0)
    acc = jnp.zeros((B, N, hidden), jnp.float32)
    for t in range(T):
        Xt = X[:, :, :, t]                                       # (B, N, Fin)
        AX = jnp.einsum("nm,bmf->bnf", A_hat, Xt)
        cz = AX @ params["wz"] + params["bz"][0]
        cr = AX @ params["wr"] + params["br"][0]
        ch = AX @ params["wh"] + params["bh"][0]
        Z = jax.nn.sigmoid(cz @ params["lz1"] + H @ params["lz2"] + params["lzb"][0])
        R = jax.nn.sigmoid(cr @ params["lr1"] + H @ params["lr2"] + params["lrb"][0])
        Ht = jnp.tanh(ch @ params["lh1"] + (H * R) @ params["lh2"] + params["lhb"][0])
        cur = Z * H + (1.0 - Z) * Ht
        acc = acc + probs[t] * cur
    acc = jax.nn.relu(acc)
    return acc @ params["fw"] + params["fb"][0]


if __name__ == "__main__":
    B, N, Fin, Hd, T = 2, 16, 4, 32, 8   # batch, nodes, in_channels, hidden, periods

    key = jax.random.PRNGKey(0)
    kx, ke, kp = jax.random.split(key, 3)

    X = jax.random.normal(kx, (B, N, Fin, T), jnp.float32)

    # small undirected graph: ring + a few extra edges
    ring_src = np.arange(N)
    ring_dst = (np.arange(N) + 1) % N
    extra_src = np.array([0, 3, 5, 7])
    extra_dst = np.array([8, 12, 10, 14])
    src = np.concatenate([ring_src, ring_dst, extra_src, extra_dst])
    dst = np.concatenate([ring_dst, ring_src, extra_dst, extra_src])
    edge_index = jnp.asarray(np.stack([src, dst]), jnp.int32)

    A_hat = build_norm_adj(edge_index, N)
    params = init_params(kp, Fin, Hd, T)

    out = temporal_gnn_forward(X, A_hat, params, Hd)
    out = jax.block_until_ready(out)

    ref = reference_forward(X, A_hat, params, Hd)
    # bf16 matmul operands (f32 accumulation) -> loosen tolerance vs f32 reference.
    np.testing.assert_allclose(np.asarray(out), np.asarray(ref), rtol=3e-2, atol=3e-2)

    print("KERNEL_OK")
</pallas_src>

<mosaic_0001>
module attributes {stable_mosaic.version = 11 : i64} {
  func.func @_a3tgcn_batched_kernel(%arg0: i32, %arg1: memref<1x16x32xbf16, #tpu.memory_space<vmem>>, %arg2: memref<1x16x32xf32, #tpu.memory_space<vmem>>, %arg3: memref<16x16xbf16, #tpu.memory_space<vmem>>, %arg4: memref<32x768xbf16, #tpu.memory_space<vmem>>, %arg5: memref<1x768xf32, #tpu.memory_space<vmem>>, %arg6: memref<32x512xbf16, #tpu.memory_space<vmem>>, %arg7: memref<256x256xbf16, #tpu.memory_space<vmem>>, %arg8: memref<256x32xbf16, #tpu.memory_space<vmem>>, %arg9: memref<32x8xbf16, #tpu.memory_space<vmem>>, %arg10: memref<1x8xf32, #tpu.memory_space<vmem>>, %arg11: memref<1x16x8xf32, #tpu.memory_space<vmem>>) attributes {dimension_semantics = [#tpu.dimension_semantics<parallel>], iteration_bounds = array<i64: 2>, scalar_prefetch = 0 : i64, scratch_operands = 0 : i64, tpu.core_type = #tpu.core_type<tc>, window_params = [{transform_indices = @transform_0, window_bounds = array<i64: 1, 16, 32>}, {transform_indices = @transform_1, window_bounds = array<i64: 1, 16, 32>}, {pipeline_mode = #tpu.pipeline_mode<synchronous>, transform_indices = @transform_2, window_bounds = array<i64: 16, 16>}, {pipeline_mode = #tpu.pipeline_mode<synchronous>, transform_indices = @transform_3, window_bounds = array<i64: 32, 768>}, {pipeline_mode = #tpu.pipeline_mode<synchronous>, transform_indices = @transform_4, window_bounds = array<i64: 1, 768>}, {pipeline_mode = #tpu.pipeline_mode<synchronous>, transform_indices = @transform_5, window_bounds = array<i64: 32, 512>}, {pipeline_mode = #tpu.pipeline_mode<synchronous>, transform_indices = @transform_6, window_bounds = array<i64: 256, 256>}, {pipeline_mode = #tpu.pipeline_mode<synchronous>, transform_indices = @transform_7, window_bounds = array<i64: 256, 32>}, {pipeline_mode = #tpu.pipeline_mode<synchronous>, transform_indices = @transform_8, window_bounds = array<i64: 32, 8>}, {pipeline_mode = #tpu.pipeline_mode<synchronous>, transform_indices = @transform_9, window_bounds = array<i64: 1, 8>}, {transform_indices = @transform_10, window_bounds = array<i64: 1, 16, 8>}]} {
    %c0 = arith.constant 0 : index
    %c0_0 = arith.constant 0 : index
    %c0_1 = arith.constant 0 : index
    %0 = vector.load %arg1[%c0, %c0_0, %c0_1] : memref<1x16x32xbf16, #tpu.memory_space<vmem>>, vector<1x16x32xbf16>
    %1 = vector.shape_cast %0 : vector<1x16x32xbf16> to vector<16x32xbf16>
    %c0_2 = arith.constant 0 : index
    %c0_3 = arith.constant 0 : index
    %c0_4 = arith.constant 0 : index
    %2 = vector.load %arg2[%c0_2, %c0_3, %c0_4] : memref<1x16x32xf32, #tpu.memory_space<vmem>>, vector<1x16x32xf32>
    %3 = vector.shape_cast %2 : vector<1x16x32xf32> to vector<16x32xf32>
    %c0_5 = arith.constant 0 : index
    %c0_6 = arith.constant 0 : index
    %4 = vector.load %arg3[%c0_5, %c0_6] : memref<16x16xbf16, #tpu.memory_space<vmem>>, vector<16x16xbf16>
    %cst = arith.constant dense<0.000000e+00> : vector<16x32xf32>
    %5 = tpu.matmul %4, %1, %cst {dimension_numbers = #tpu.dot_dimension_numbers<[1], [0], [0], [1], [0, 0, 1, 1], [], []>} : vector<16x16xbf16>, vector<16x32xbf16>, vector<16x32xf32> -> vector<16x32xf32>
    %6 = arith.truncf %5 : vector<16x32xf32> to vector<16x32xbf16>
    %c0_7 = arith.constant 0 : index
    %c0_8 = arith.constant 0 : index
    %7 = vector.load %arg4[%c0_7, %c0_8] : memref<32x768xbf16, #tpu.memory_space<vmem>>, vector<32x768xbf16>
    %cst_9 = arith.constant dense<0.000000e+00> : vector<16x768xf32>
    %8 = tpu.matmul %6, %7, %cst_9 {dimension_numbers = #tpu.dot_dimension_numbers<[1], [0], [0], [1], [0, 0, 1, 1], [], []>} : vector<16x32xbf16>, vector<32x768xbf16>, vector<16x768xf32> -> vector<16x768xf32>
    %c0_10 = arith.constant 0 : index
    %c0_11 = arith.constant 0 : index
    %9 = vector.load %arg5[%c0_10, %c0_11] : memref<1x768xf32, #tpu.memory_space<vmem>>, vector<1x768xf32>
    %10 = vector.shape_cast %9 : vector<1x768xf32> to vector<768xf32>
    %11 = vector.shape_cast %10 : vector<768xf32> to vector<1x768xf32>
    %12 = vector.broadcast %11 : vector<1x768xf32> to vector<16x768xf32>
    %13 = arith.addf %8, %12 : vector<16x768xf32>
    %14 = vector.extract_strided_slice %13 {offsets = [0, 0], sizes = [16, 256], strides = [1, 1]} : vector<16x768xf32> to vector<16x256xf32>
    %15 = vector.extract_strided_slice %13 {offsets = [0, 256], sizes = [16, 256], strides = [1, 1]} : vector<16x768xf32> to vector<16x256xf32>
    %16 = vector.extract_strided_slice %13 {offsets = [0, 512], sizes = [16, 256], strides = [1, 1]} : vector<16x768xf32> to vector<16x256xf32>
    %17 = arith.truncf %3 : vector<16x32xf32> to vector<16x32xbf16>
    %c0_12 = arith.constant 0 : index
    %c0_13 = arith.constant 0 : index
    %18 = vector.load %arg6[%c0_12, %c0_13] : memref<32x512xbf16, #tpu.memory_space<vmem>>, vector<32x512xbf16>
    %cst_14 = arith.constant dense<0.000000e+00> : vector<16x512xf32>
    %19 = tpu.matmul %17, %18, %cst_14 {dimension_numbers = #tpu.dot_dimension_numbers<[1], [0], [0], [1], [0, 0, 1, 1], [], []>} : vector<16x32xbf16>, vector<32x512xbf16>, vector<16x512xf32> -> vector<16x512xf32>
    %20 = vector.extract_strided_slice %19 {offsets = [0, 0], sizes = [16, 256], strides = [1, 1]} : vector<16x512xf32> to vector<16x256xf32>
    %21 = vector.extract_strided_slice %19 {offsets = [0, 256], sizes = [16, 256], strides = [1, 1]} : vector<16x512xf32> to vector<16x256xf32>
    %22 = tpu.concatenate %3, %3, %3, %3, %3, %3, %3, %3 in 1 : vector<16x32xf32>, vector<16x32xf32>, vector<16x32xf32>, vector<16x32xf32>, vector<16x32xf32>, vector<16x32xf32>, vector<16x32xf32>, vector<16x32xf32> -> vector<16x256xf32>
    %23 = arith.addf %14, %20 : vector<16x256xf32>
    %24 = arith.negf %23 : vector<16x256xf32>
    %25 = math.exp %24 : vector<16x256xf32>
    %cst_15 = arith.constant 1.000000e+00 : f32
    %26 = vector.broadcast %cst_15 : f32 to vector<16x256xf32>
    %27 = arith.addf %26, %25 : vector<16x256xf32>
    %28 = arith.divf %26, %27 : vector<16x256xf32>
    %29 = arith.addf %15, %21 : vector<16x256xf32>
    %30 = arith.negf %29 : vector<16x256xf32>
    %31 = math.exp %30 : vector<16x256xf32>
    %cst_16 = arith.constant 1.000000e+00 : f32
    %32 = vector.broadcast %cst_16 : f32 to vector<16x256xf32>
    %33 = arith.addf %32, %31 : vector<16x256xf32>
    %34 = arith.divf %32, %33 : vector<16x256xf32>
    %35 = arith.mulf %22, %34 : vector<16x256xf32>
    %36 = arith.truncf %35 : vector<16x256xf32> to vector<16x256xbf16>
    %c0_17 = arith.constant 0 : index
    %c0_18 = arith.constant 0 : index
    %37 = vector.load %arg7[%c0_17, %c0_18] : memref<256x256xbf16, #tpu.memory_space<vmem>>, vector<256x256xbf16>
    %cst_19 = arith.constant dense<0.000000e+00> : vector<16x256xf32>
    %38 = tpu.matmul %36, %37, %cst_19 {dimension_numbers = #tpu.dot_dimension_numbers<[1], [0], [0], [1], [0, 0, 1, 1], [], []>} : vector<16x256xbf16>, vector<256x256xbf16>, vector<16x256xf32> -> vector<16x256xf32>
    %39 = arith.addf %16, %38 : vector<16x256xf32>
    %40 = math.tanh %39 : vector<16x256xf32>
    %41 = arith.mulf %28, %22 : vector<16x256xf32>
    %cst_20 = arith.constant 1.000000e+00 : f32
    %42 = vector.broadcast %cst_20 : f32 to vector<16x256xf32>
    %43 = arith.subf %42, %28 : vector<16x256xf32>
    %44 = arith.mulf %43, %40 : vector<16x256xf32>
    %45 = arith.addf %41, %44 : vector<16x256xf32>
    %46 = arith.truncf %45 : vector<16x256xf32> to vector<16x256xbf16>
    %c0_21 = arith.constant 0 : index
    %c0_22 = arith.constant 0 : index
    %47 = vector.load %arg8[%c0_21, %c0_22] : memref<256x32xbf16, #tpu.memory_space<vmem>>, vector<256x32xbf16>
    %cst_23 = arith.constant dense<0.000000e+00> : vector<16x32xf32>
    %48 = tpu.matmul %46, %47, %cst_23 {dimension_numbers = #tpu.dot_dimension_numbers<[1], [0], [0], [1], [0, 0, 1, 1], [], []>} : vector<16x256xbf16>, vector<256x32xbf16>, vector<16x32xf32> -> vector<16x32xf32>
    %cst_24 = arith.constant 0.000000e+00 : f32
    %49 = vector.broadcast %cst_24 : f32 to vector<16x32xf32>
    %50 = arith.maximumf %48, %49 : vector<16x32xf32>
    %51 = arith.truncf %50 : vector<16x32xf32> to vector<16x32xbf16>
    %c0_25 = arith.constant 0 : index
    %c0_26 = arith.constant 0 : index
    %52 = vector.load %arg9[%c0_25, %c0_26] : memref<32x8xbf16, #tpu.memory_space<vmem>>, vector<32x8xbf16>
    %cst_27 = arith.constant dense<0.000000e+00> : vector<16x8xf32>
    %53 = tpu.matmul %51, %52, %cst_27 {dimension_numbers = #tpu.dot_dimension_numbers<[1], [0], [0], [1], [0, 0, 1, 1], [], []>} : vector<16x32xbf16>, vector<32x8xbf16>, vector<16x8xf32> -> vector<16x8xf32>
    %c0_28 = arith.constant 0 : index
    %c0_29 = arith.constant 0 : index
    %54 = vector.load %arg10[%c0_28, %c0_29] : memref<1x8xf32, #tpu.memory_space<vmem>>, vector<1x8xf32>
    %55 = vector.shape_cast %54 : vector<1x8xf32> to vector<8xf32>
    %56 = vector.shape_cast %55 : vector<8xf32> to vector<1x8xf32>
    %57 = vector.broadcast %56 : vector<1x8xf32> to vector<16x8xf32>
    %58 = arith.addf %53, %57 : vector<16x8xf32>
    %c0_30 = arith.constant 0 : index
    %c0_31 = arith.constant 0 : index
    %c0_32 = arith.constant 0 : index
    %59 = vector.load %arg11[%c0_30, %c0_31, %c0_32] : memref<1x16x8xf32, #tpu.memory_space<vmem>>, vector<1x16x8xf32>
    %60 = vector.shape_cast %59 : vector<1x16x8xf32> to vector<16x8xf32>
    %61 = vector.shape_cast %58 : vector<16x8xf32> to vector<1x16x8xf32>
    tpu.vector_store %arg11[%c0_30, %c0_31, %c0_32], %61 {strides = array<i32>} : memref<1x16x8xf32, #tpu.memory_space<vmem>>, vector<1x16x8xf32>,
    return
  }
  func.func @transform_0(%arg0: i32) -> (i32, i32, i32) {
    %c0_i32 = arith.constant 0 : i32
    %c0_i32_0 = arith.constant 0 : i32
    %c0_i32_1 = arith.constant 0 : i32
    return %arg0, %c0_i32, %c0_i32_0 : i32, i32, i32
  }
  func.func @transform_1(%arg0: i32) -> (i32, i32, i32) {
    %c0_i32 = arith.constant 0 : i32
    %c0_i32_0 = arith.constant 0 : i32
    %c0_i32_1 = arith.constant 0 : i32
    return %arg0, %c0_i32, %c0_i32_0 : i32, i32, i32
  }
  func.func @transform_2(%arg0: i32) -> (i32, i32) {
    %c0_i32 = arith.constant 0 : i32
    %c0_i32_0 = arith.constant 0 : i32
    %c0_i32_1 = arith.constant 0 : i32
    return %c0_i32, %c0_i32_0 : i32, i32
  }
  func.func @transform_3(%arg0: i32) -> (i32, i32) {
    %c0_i32 = arith.constant 0 : i32
    %c0_i32_0 = arith.constant 0 : i32
    %c0_i32_1 = arith.constant 0 : i32
    return %c0_i32, %c0_i32_0 : i32, i32
  }
  func.func @transform_4(%arg0: i32) -> (i32, i32) {
    %c0_i32 = arith.constant 0 : i32
    %c0_i32_0 = arith.constant 0 : i32
    %c0_i32_1 = arith.constant 0 : i32
    return %c0_i32, %c0_i32_0 : i32, i32
  }
  func.func @transform_5(%arg0: i32) -> (i32, i32) {
    %c0_i32 = arith.constant 0 : i32
    %c0_i32_0 = arith.constant 0 : i32
    %c0_i32_1 = arith.constant 0 : i32
    return %c0_i32, %c0_i32_0 : i32, i32
  }
  func.func @transform_6(%arg0: i32) -> (i32, i32) {
    %c0_i32 = arith.constant 0 : i32
    %c0_i32_0 = arith.constant 0 : i32
    %c0_i32_1 = arith.constant 0 : i32
    return %c0_i32, %c0_i32_0 : i32, i32
  }
  func.func @transform_7(%arg0: i32) -> (i32, i32) {
    %c0_i32 = arith.constant 0 : i32
    %c0_i32_0 = arith.constant 0 : i32
    %c0_i32_1 = arith.constant 0 : i32
    return %c0_i32, %c0_i32_0 : i32, i32
  }
  func.func @transform_8(%arg0: i32) -> (i32, i32) {
    %c0_i32 = arith.constant 0 : i32
    %c0_i32_0 = arith.constant 0 : i32
    %c0_i32_1 = arith.constant 0 : i32
    return %c0_i32, %c0_i32_0 : i32, i32
  }
  func.func @transform_9(%arg0: i32) -> (i32, i32) {
    %c0_i32 = arith.constant 0 : i32
    %c0_i32_0 = arith.constant 0 : i32
    %c0_i32_1 = arith.constant 0 : i32
    return %c0_i32, %c0_i32_0 : i32, i32
  }
  func.func @transform_10(%arg0: i32) -> (i32, i32, i32) {
    %c0_i32 = arith.constant 0 : i32
    %c0_i32_0 = arith.constant 0 : i32
    %c0_i32_1 = arith.constant 0 : i32
    return %arg0, %c0_i32, %c0_i32_0 : i32, i32, i32
  }
}

</mosaic_0001>

<llo_original>
// kernel: tile.0
$region0: #{tile.0}
  %s0 = inlined_call_operand.vmem [shape: bf16[32,8,32], index: 0, kind: input, shape index: {}]
  %s1 = inlined_call_operand.vmem [shape: bf16[32,256], index: 1, kind: output, shape index: {}]
  $region1: #{tile.0} parent=0
    #allocation0 [shape = 'u8[32768]{0}', space=vmem, size = 0x8000, scoped, tag = 'scoped mem for output reshape']
    #allocation1 [shape = 'u8[131072]{0}', space=vmem, size = 0x20000, scoped, tag = 'scoped mem for input reshape']
    %s3 = smul.u32 4, 2
    %s4 = sshllo.u32 0, %s3
    %s5 = smul.addr 4, 31
    %s6 = scalar_lea.vmem %s0, %s5
    %s7 = sshrl.u32 %s4, 1
    %s8 = sor.u32 %s4, %s7
    %s9 = sand.u32 %s8, 85
    %s10 = sshrl.u32 %s9, 1
    %s11 = sor.u32 %s9, %s10
    %s12 = sand.u32 51, %s11
    %s13 = sshrl.u32 %s12, 2
    %s14 = sor.u32 %s12, %s13
    %s15 = sand.u32 15, %s14
    %v16 = vld [vmem:[%s6] sm:%s15]
    %v17 = vunpack.c.l.bf16 %v16
    %v18 = vunpack.c.h.bf16 %v16
    %s19 = scalar_lea.vmem [#allocation1], 248
    %20 = vst [vmem:[%s19] sm:%s4] %v17
    %s21 = smul.addr 4, 30
    %s22 = scalar_lea.vmem %s0, %s21
    %s23 = sshrl.u32 %s4, 1
    %s24 = sor.u32 %s4, %s23
    %s25 = sand.u32 %s24, 85
    %s26 = sshrl.u32 %s25, 1
    %s27 = sor.u32 %s25, %s26
    %s28 = sand.u32 51, %s27
    %s29 = sshrl.u32 %s28, 2
    %s30 = sor.u32 %s28, %s29
    %s31 = sand.u32 15, %s30
    %v32 = vld [vmem:[%s22] sm:%s31]
    %v33 = vunpack.c.l.bf16 %v32
    %v34 = vunpack.c.h.bf16 %v32
    %s35 = scalar_lea.vmem [#allocation1], 240
    %36 = vst [vmem:[%s35] sm:%s4] %v33
    %s37 = smul.addr 4, 29
    %s38 = scalar_lea.vmem %s0, %s37
    %s39 = sshrl.u32 %s4, 1
    %s40 = sor.u32 %s4, %s39
    %s41 = sand.u32 %s40, 85
    %s42 = sshrl.u32 %s41, 1
    %s43 = sor.u32 %s41, %s42
    %s44 = sand.u32 51, %s43
    %s45 = sshrl.u32 %s44, 2
    %s46 = sor.u32 %s44, %s45
    %s47 = sand.u32 15, %s46
    %v48 = vld [vmem:[%s38] sm:%s47]
    %v49 = vunpack.c.l.bf16 %v48
    %v50 = vunpack.c.h.bf16 %v48
    %s51 = scalar_lea.vmem [#allocation1], 232
    %52 = vst [vmem:[%s51] sm:%s4] %v49
    %s53 = smul.addr 4, 28
    %s54 = scalar_lea.vmem %s0, %s53
    %s55 = sshrl.u32 %s4, 1
    %s56 = sor.u32 %s4, %s55
    %s57 = sand.u32 %s56, 85
    %s58 = sshrl.u32 %s57, 1
    %s59 = sor.u32 %s57, %s58
    %s60 = sand.u32 51, %s59
    %s61 = sshrl.u32 %s60, 2
    %s62 = sor.u32 %s60, %s61
    %s63 = sand.u32 15, %s62
    %v64 = vld [vmem:[%s54] sm:%s63]
    %v65 = vunpack.c.l.bf16 %v64
    %v66 = vunpack.c.h.bf16 %v64
    %s67 = scalar_lea.vmem [#allocation1], 224
    %68 = vst [vmem:[%s67] sm:%s4] %v65
    %s69 = smul.addr 4, 27
    %s70 = scalar_lea.vmem %s0, %s69
    %s71 = sshrl.u32 %s4, 1
    %s72 = sor.u32 %s4, %s71
    %s73 = sand.u32 %s72, 85
    %s74 = sshrl.u32 %s73, 1
    %s75 = sor.u32 %s73, %s74
    %s76 = sand.u32 51, %s75
    %s77 = sshrl.u32 %s76, 2
    %s78 = sor.u32 %s76, %s77
    %s79 = sand.u32 15, %s78
    %v80 = vld [vmem:[%s70] sm:%s79]
    %v81 = vunpack.c.l.bf16 %v80
    %v82 = vunpack.c.h.bf16 %v80
    %s83 = scalar_lea.vmem [#allocation1], 216
    %84 = vst [vmem:[%s83] sm:%s4] %v81
    %s85 = smul.addr 4, 26
    %s86 = scalar_lea.vmem %s0, %s85
    %s87 = sshrl.u32 %s4, 1
    %s88 = sor.u32 %s4, %s87
    %s89 = sand.u32 %s88, 85
    %s90 = sshrl.u32 %s89, 1
    %s91 = sor.u32 %s89, %s90
    %s92 = sand.u32 51, %s91
    %s93 = sshrl.u32 %s92, 2
    %s94 = sor.u32 %s92, %s93
    %s95 = sand.u32 15, %s94
    %v96 = vld [vmem:[%s86] sm:%s95]
    %v97 = vunpack.c.l.bf16 %v96
    %v98 = vunpack.c.h.bf16 %v96
    %s99 = scalar_lea.vmem [#allocation1], 208
    %100 = vst [vmem:[%s99] sm:%s4] %v97
    %s101 = smul.addr 4, 25
    %s102 = scalar_lea.vmem %s0, %s101
    %s103 = sshrl.u32 %s4, 1
    %s104 = sor.u32 %s4, %s103
    %s105 = sand.u32 %s104, 85
    %s106 = sshrl.u32 %s105, 1
    %s107 = sor.u32 %s105, %s106
    %s108 = sand.u32 51, %s107
    %s109 = sshrl.u32 %s108, 2
    %s110 = sor.u32 %s108, %s109
    %s111 = sand.u32 15, %s110
    %v112 = vld [vmem:[%s102] sm:%s111]
    %v113 = vunpack.c.l.bf16 %v112
    %v114 = vunpack.c.h.bf16 %v112
    %s115 = scalar_lea.vmem [#allocation1], 200
    %116 = vst [vmem:[%s115] sm:%s4] %v113
    %s117 = smul.addr 4, 24
    %s118 = scalar_lea.vmem %s0, %s117
    %s119 = sshrl.u32 %s4, 1
    %s120 = sor.u32 %s4, %s119
    %s121 = sand.u32 %s120, 85
    %s122 = sshrl.u32 %s121, 1
    %s123 = sor.u32 %s121, %s122
    %s124 = sand.u32 51, %s123
    %s125 = sshrl.u32 %s124, 2
    %s126 = sor.u32 %s124, %s125
    %s127 = sand.u32 15, %s126
    %v128 = vld [vmem:[%s118] sm:%s127]
    %v129 = vunpack.c.l.bf16 %v128
    %v130 = vunpack.c.h.bf16 %v128
    %s131 = scalar_lea.vmem [#allocation1], 192
    %132 = vst [vmem:[%s131] sm:%s4] %v129
    %s133 = smul.addr 4, 23
    %s134 = scalar_lea.vmem %s0, %s133
    %s135 = sshrl.u32 %s4, 1
    %s136 = sor.u32 %s4, %s135
    %s137 = sand.u32 %s136, 85
    %s138 = sshrl.u32 %s137, 1
    %s139 = sor.u32 %s137, %s138
    %s140 = sand.u32 51, %s139
    %s141 = sshrl.u32 %s140, 2
    %s142 = sor.u32 %s140, %s141
    %s143 = sand.u32 15, %s142
    %v144 = vld [vmem:[%s134] sm:%s143]
    %v145 = vunpack.c.l.bf16 %v144
    %v146 = vunpack.c.h.bf16 %v144
    %s147 = scalar_lea.vmem [#allocation1], 184
    %148 = vst [vmem:[%s147] sm:%s4] %v145
    %s149 = smul.addr 4, 22
    %s150 = scalar_lea.vmem %s0, %s149
    %s151 = sshrl.u32 %s4, 1
    %s152 = sor.u32 %s4, %s151
    %s153 = sand.u32 %s152, 85
    %s154 = sshrl.u32 %s153, 1
    %s155 = sor.u32 %s153, %s154
    %s156 = sand.u32 51, %s155
    %s157 = sshrl.u32 %s156, 2
    %s158 = sor.u32 %s156, %s157
    %s159 = sand.u32 15, %s158
    %v160 = vld [vmem:[%s150] sm:%s159]
    %v161 = vunpack.c.l.bf16 %v160
    %v162 = vunpack.c.h.bf16 %v160
    %s163 = scalar_lea.vmem [#allocation1], 176
    %164 = vst [vmem:[%s163] sm:%s4] %v161
    %s165 = smul.addr 4, 21
    %s166 = scalar_lea.vmem %s0, %s165
    %s167 = sshrl.u32 %s4, 1
    %s168 = sor.u32 %s4, %s167
    %s169 = sand.u32 %s168, 85
    %s170 = sshrl.u32 %s169, 1
    %s171 = sor.u32 %s169, %s170
    %s172 = sand.u32 51, %s171
    %s173 = sshrl.u32 %s172, 2
    %s174 = sor.u32 %s172, %s173
    %s175 = sand.u32 15, %s174
    %v176 = vld [vmem:[%s166] sm:%s175]
    %v177 = vunpack.c.l.bf16 %v176
    %v178 = vunpack.c.h.bf16 %v176
    %s179 = scalar_lea.vmem [#allocation1], 168
    %180 = vst [vmem:[%s179] sm:%s4] %v177
    %s181 = smul.addr 4, 20
    %s182 = scalar_lea.vmem %s0, %s181
    %s183 = sshrl.u32 %s4, 1
    %s184 = sor.u32 %s4, %s183
    %s185 = sand.u32 %s184, 85
    %s186 = sshrl.u32 %s185, 1
    %s187 = sor.u32 %s185, %s186
    %s188 = sand.u32 51, %s187
    %s189 = sshrl.u32 %s188, 2
    %s190 = sor.u32 %s188, %s189
    %s191 = sand.u32 15, %s190
    %v192 = vld [vmem:[%s182] sm:%s191]
    %v193 = vunpack.c.l.bf16 %v192
    %v194 = vunpack.c.h.bf16 %v192
    %s195 = scalar_lea.vmem [#allocation1], 160
    %196 = vst [vmem:[%s195] sm:%s4] %v193
    %s197 = smul.addr 4, 19
    %s198 = scalar_lea.vmem %s0, %s197
    %s199 = sshrl.u32 %s4, 1
    %s200 = sor.u32 %s4, %s199
    %s201 = sand.u32 %s200, 85
    %s202 = sshrl.u32 %s201, 1
    %s203 = sor.u32 %s201, %s202
    %s204 = sand.u32 51, %s203
    %s205 = sshrl.u32 %s204, 2
    %s206 = sor.u32 %s204, %s205
    %s207 = sand.u32 15, %s206
    %v208 = vld [vmem:[%s198] sm:%s207]
    %v209 = vunpack.c.l.bf16 %v208
    %v210 = vunpack.c.h.bf16 %v208
    %s211 = scalar_lea.vmem [#allocation1], 152
    %212 = vst [vmem:[%s211] sm:%s4] %v209
    %s213 = smul.addr 4, 18
    %s214 = scalar_lea.vmem %s0, %s213
    %s215 = sshrl.u32 %s4, 1
    %s216 = sor.u32 %s4, %s215
    %s217 = sand.u32 %s216, 85
    %s218 = sshrl.u32 %s217, 1
    %s219 = sor.u32 %s217, %s218
    %s220 = sand.u32 51, %s219
    %s221 = sshrl.u32 %s220, 2
    %s222 = sor.u32 %s220, %s221
    %s223 = sand.u32 15, %s222
    %v224 = vld [vmem:[%s214] sm:%s223]
    %v225 = vunpack.c.l.bf16 %v224
    %v226 = vunpack.c.h.bf16 %v224
    %s227 = scalar_lea.vmem [#allocation1], 144
    %228 = vst [vmem:[%s227] sm:%s4] %v225
    %s229 = smul.addr 4, 17
    %s230 = scalar_lea.vmem %s0, %s229
    %s231 = sshrl.u32 %s4, 1
    %s232 = sor.u32 %s4, %s231
    %s233 = sand.u32 %s232, 85
    %s234 = sshrl.u32 %s233, 1
    %s235 = sor.u32 %s233, %s234
    %s236 = sand.u32 51, %s235
    %s237 = sshrl.u32 %s236, 2
    %s238 = sor.u32 %s236, %s237
    %s239 = sand.u32 15, %s238
    %v240 = vld [vmem:[%s230] sm:%s239]
    %v241 = vunpack.c.l.bf16 %v240
    %v242 = vunpack.c.h.bf16 %v240
    %s243 = scalar_lea.vmem [#allocation1], 136
    %244 = vst [vmem:[%s243] sm:%s4] %v241
    %s245 = smul.addr 4, 16
    %s246 = scalar_lea.vmem %s0, %s245
    %s247 = sshrl.u32 %s4, 1
    %s248 = sor.u32 %s4, %s247
    %s249 = sand.u32 %s248, 85
    %s250 = sshrl.u32 %s249, 1
    %s251 = sor.u32 %s249, %s250
    %s252 = sand.u32 51, %s251
    %s253 = sshrl.u32 %s252, 2
    %s254 = sor.u32 %s252, %s253
    %s255 = sand.u32 15, %s254
    %v256 = vld [vmem:[%s246] sm:%s255]
    %v257 = vunpack.c.l.bf16 %v256
    %v258 = vunpack.c.h.bf16 %v256
    %s259 = scalar_lea.vmem [#allocation1], 128
    %260 = vst [vmem:[%s259] sm:%s4] %v257
    %s261 = smul.addr 4, 15
    %s262 = scalar_lea.vmem %s0, %s261
    %s263 = sshrl.u32 %s4, 1
    %s264 = sor.u32 %s4, %s263
    %s265 = sand.u32 %s264, 85
    %s266 = sshrl.u32 %s265, 1
    %s267 = sor.u32 %s265, %s266
    %s268 = sand.u32 51, %s267
    %s269 = sshrl.u32 %s268, 2
    %s270 = sor.u32 %s268, %s269
    %s271 = sand.u32 15, %s270
    %v272 = vld [vmem:[%s262] sm:%s271]
    %v273 = vunpack.c.l.bf16 %v272
    %v274 = vunpack.c.h.bf16 %v272
    %s275 = scalar_lea.vmem [#allocation1], 120
    %276 = vst [vmem:[%s275] sm:%s4] %v273
    %s277 = smul.addr 4, 14
    %s278 = scalar_lea.vmem %s0, %s277
    %s279 = sshrl.u32 %s4, 1
    %s280 = sor.u32 %s4, %s279
    %s281 = sand.u32 %s280, 85
    %s282 = sshrl.u32 %s281, 1
    %s283 = sor.u32 %s281, %s282
    %s284 = sand.u32 51, %s283
    %s285 = sshrl.u32 %s284, 2
    %s286 = sor.u32 %s284, %s285
    %s287 = sand.u32 15, %s286
    %v288 = vld [vmem:[%s278] sm:%s287]
    %v289 = vunpack.c.l.bf16 %v288
    %v290 = vunpack.c.h.bf16 %v288
    %s291 = scalar_lea.vmem [#allocation1], 112
    %292 = vst [vmem:[%s291] sm:%s4] %v289
    %s293 = smul.addr 4, 13
    %s294 = scalar_lea.vmem %s0, %s293
    %s295 = sshrl.u32 %s4, 1
    %s296 = sor.u32 %s4, %s295
    %s297 = sand.u32 %s296, 85
    %s298 = sshrl.u32 %s297, 1
    %s299 = sor.u32 %s297, %s298
    %s300 = sand.u32 51, %s299
    %s301 = sshrl.u32 %s300, 2
    %s302 = sor.u32 %s300, %s301
    %s303 = sand.u32 15, %s302
    %v304 = vld [vmem:[%s294] sm:%s303]
    %v305 = vunpack.c.l.bf16 %v304
    %v306 = vunpack.c.h.bf16 %v304
    %s307 = scalar_lea.vmem [#allocation1], 104
    %308 = vst [vmem:[%s307] sm:%s4] %v305
    %s309 = smul.addr 4, 12
    %s310 = scalar_lea.vmem %s0, %s309
    %s311 = sshrl.u32 %s4, 1
    %s312 = sor.u32 %s4, %s311
    %s313 = sand.u32 %s312, 85
    %s314 = sshrl.u32 %s313, 1
    %s315 = sor.u32 %s313, %s314
    %s316 = sand.u32 51, %s315
    %s317 = sshrl.u32 %s316, 2
    %s318 = sor.u32 %s316, %s317
    %s319 = sand.u32 15, %s318
    %v320 = vld [vmem:[%s310] sm:%s319]
    %v321 = vunpack.c.l.bf16 %v320
    %v322 = vunpack.c.h.bf16 %v320
    %s323 = scalar_lea.vmem [#allocation1], 96
    %324 = vst [vmem:[%s323] sm:%s4] %v321
    %s325 = smul.addr 4, 11
    %s326 = scalar_lea.vmem %s0, %s325
    %s327 = sshrl.u32 %s4, 1
    %s328 = sor.u32 %s4, %s327
    %s329 = sand.u32 %s328, 85
    %s330 = sshrl.u32 %s329, 1
    %s331 = sor.u32 %s329, %s330
    %s332 = sand.u32 51, %s331
    %s333 = sshrl.u32 %s332, 2
    %s334 = sor.u32 %s332, %s333
    %s335 = sand.u32 15, %s334
    %v336 = vld [vmem:[%s326] sm:%s335]
    %v337 = vunpack.c.l.bf16 %v336
    %v338 = vunpack.c.h.bf16 %v336
    %s339 = scalar_lea.vmem [#allocation1], 88
    %340 = vst [vmem:[%s339] sm:%s4] %v337
    %s341 = smul.addr 4, 10
    %s342 = scalar_lea.vmem %s0, %s341
    %s343 = sshrl.u32 %s4, 1
    %s344 = sor.u32 %s4, %s343
    %s345 = sand.u32 %s344, 85
    %s346 = sshrl.u32 %s345, 1
    %s347 = sor.u32 %s345, %s346
    %s348 = sand.u32 51, %s347
    %s349 = sshrl.u32 %s348, 2
    %s350 = sor.u32 %s348, %s349
    %s351 = sand.u32 15, %s350
    %v352 = vld [vmem:[%s342] sm:%s351]
    %v353 = vunpack.c.l.bf16 %v352
    %v354 = vunpack.c.h.bf16 %v352
    %s355 = scalar_lea.vmem [#allocation1], 80
    %356 = vst [vmem:[%s355] sm:%s4] %v353
    %s357 = smul.addr 4, 9
    %s358 = scalar_lea.vmem %s0, %s357
    %s359 = sshrl.u32 %s4, 1
    %s360 = sor.u32 %s4, %s359
    %s361 = sand.u32 %s360, 85
    %s362 = sshrl.u32 %s361, 1
    %s363 = sor.u32 %s361, %s362
    %s364 = sand.u32 51, %s363
    %s365 = sshrl.u32 %s364, 2
    %s366 = sor.u32 %s364, %s365
    %s367 = sand.u32 15, %s366
    %v368 = vld [vmem:[%s358] sm:%s367]
    %v369 = vunpack.c.l.bf16 %v368
    %v370 = vunpack.c.h.bf16 %v368
    %s371 = scalar_lea.vmem [#allocation1], 72
    %372 = vst [vmem:[%s371] sm:%s4] %v369
    %s373 = smul.addr 4, 8
    %s374 = scalar_lea.vmem %s0, %s373
    %s375 = sshrl.u32 %s4, 1
    %s376 = sor.u32 %s4, %s375
    %s377 = sand.u32 %s376, 85
    %s378 = sshrl.u32 %s377, 1
    %s379 = sor.u32 %s377, %s378
    %s380 = sand.u32 51, %s379
    %s381 = sshrl.u32 %s380, 2
    %s382 = sor.u32 %s380, %s381
    %s383 = sand.u32 15, %s382
    %v384 = vld [vmem:[%s374] sm:%s383]
    %v385 = vunpack.c.l.bf16 %v384
    %v386 = vunpack.c.h.bf16 %v384
    %s387 = scalar_lea.vmem [#allocation1], 64
    %388 = vst [vmem:[%s387] sm:%s4] %v385
    %s389 = smul.addr 4, 7
    %s390 = scalar_lea.vmem %s0, %s389
    %s391 = sshrl.u32 %s4, 1
    %s392 = sor.u32 %s4, %s391
    %s393 = sand.u32 %s392, 85
    %s394 = sshrl.u32 %s393, 1
    %s395 = sor.u32 %s393, %s394
    %s396 = sand.u32 51, %s395
    %s397 = sshrl.u32 %s396, 2
    %s398 = sor.u32 %s396, %s397
    %s399 = sand.u32 15, %s398
    %v400 = vld [vmem:[%s390] sm:%s399]
    %v401 = vunpack.c.l.bf16 %v400
    %v402 = vunpack.c.h.bf16 %v400
    %s403 = scalar_lea.vmem [#allocation1], 56
    %404 = vst [vmem:[%s403] sm:%s4] %v401
    %s405 = smul.addr 4, 6
    %s406 = scalar_lea.vmem %s0, %s405
    %s407 = sshrl.u32 %s4, 1
    %s408 = sor.u32 %s4, %s407
    %s409 = sand.u32 %s408, 85
    %s410 = sshrl.u32 %s409, 1
    %s411 = sor.u32 %s409, %s410
    %s412 = sand.u32 51, %s411
    %s413 = sshrl.u32 %s412, 2
    %s414 = sor.u32 %s412, %s413
    %s415 = sand.u32 15, %s414
    %v416 = vld [vmem:[%s406] sm:%s415]
    %v417 = vunpack.c.l.bf16 %v416
    %v418 = vunpack.c.h.bf16 %v416
    %s419 = scalar_lea.vmem [#allocation1], 48
    %420 = vst [vmem:[%s419] sm:%s4] %v417
    %s421 = smul.addr 4, 5
    %s422 = scalar_lea.vmem %s0, %s421
    %s423 = sshrl.u32 %s4, 1
    %s424 = sor.u32 %s4, %s423
    %s425 = sand.u32 %s424, 85
    %s426 = sshrl.u32 %s425, 1
    %s427 = sor.u32 %s425, %s426
    %s428 = sand.u32 51, %s427
    %s429 = sshrl.u32 %s428, 2
    %s430 = sor.u32 %s428, %s429
    %s431 = sand.u32 15, %s430
    %v432 = vld [vmem:[%s422] sm:%s431]
    %v433 = vunpack.c.l.bf16 %v432
    %v434 = vunpack.c.h.bf16 %v432
    %s435 = scalar_lea.vmem [#allocation1], 40
    %436 = vst [vmem:[%s435] sm:%s4] %v433
    %s437 = smul.addr 4, 4
    %s438 = scalar_lea.vmem %s0, %s437
    %s439 = sshrl.u32 %s4, 1
    %s440 = sor.u32 %s4, %s439
    %s441 = sand.u32 %s440, 85
    %s442 = sshrl.u32 %s441, 1
    %s443 = sor.u32 %s441, %s442
    %s444 = sand.u32 51, %s443
    %s445 = sshrl.u32 %s444, 2
    %s446 = sor.u32 %s444, %s445
    %s447 = sand.u32 15, %s446
    %v448 = vld [vmem:[%s438] sm:%s447]
    %v449 = vunpack.c.l.bf16 %v448
    %v450 = vunpack.c.h.bf16 %v448
    %s451 = scalar_lea.vmem [#allocation1], 32
    %452 = vst [vmem:[%s451] sm:%s4] %v449
    %s453 = smul.addr 4, 3
    %s454 = scalar_lea.vmem %s0, %s453
    %s455 = sshrl.u32 %s4, 1
    %s456 = sor.u32 %s4, %s455
    %s457 = sand.u32 %s456, 85
    %s458 = sshrl.u32 %s457, 1
    %s459 = sor.u32 %s457, %s458
    %s460 = sand.u32 51, %s459
    %s461 = sshrl.u32 %s460, 2
    %s462 = sor.u32 %s460, %s461
    %s463 = sand.u32 15, %s462
    %v464 = vld [vmem:[%s454] sm:%s463]
    %v465 = vunpack.c.l.bf16 %v464
    %v466 = vunpack.c.h.bf16 %v464
    %s467 = scalar_lea.vmem [#allocation1], 24
    %468 = vst [vmem:[%s467] sm:%s4] %v465
    %s469 = smul.addr 4, 2
    %s470 = scalar_lea.vmem %s0, %s469
    %s471 = sshrl.u32 %s4, 1
    %s472 = sor.u32 %s4, %s471
    %s473 = sand.u32 %s472, 85
    %s474 = sshrl.u32 %s473, 1
    %s475 = sor.u32 %s473, %s474
    %s476 = sand.u32 51, %s475
    %s477 = sshrl.u32 %s476, 2
    %s478 = sor.u32 %s476, %s477
    %s479 = sand.u32 15, %s478
    %v480 = vld [vmem:[%s470] sm:%s479]
    %v481 = vunpack.c.l.bf16 %v480
    %v482 = vunpack.c.h.bf16 %v480
    %s483 = scalar_lea.vmem [#allocation1], 16
    %484 = vst [vmem:[%s483] sm:%s4] %v481
    %s485 = scalar_lea.vmem %s0, 4
    %s486 = sshrl.u32 %s4, 1
    %s487 = sor.u32 %s4, %s486
    %s488 = sand.u32 %s487, 85
    %s489 = sshrl.u32 %s488, 1
    %s490 = sor.u32 %s488, %s489
    %s491 = sand.u32 51, %s490
    %s492 = sshrl.u32 %s491, 2
    %s493 = sor.u32 %s491, %s492
    %s494 = sand.u32 15, %s493
    %v495 = vld [vmem:[%s485] sm:%s494]
    %v496 = vunpack.c.l.bf16 %v495
    %v497 = vunpack.c.h.bf16 %v495
    %s498 = scalar_lea.vmem [#allocation1], 8
    %499 = vst [vmem:[%s498] sm:%s4] %v496
    %s500 = sshrl.u32 %s4, 1
    %s501 = sor.u32 %s4, %s500
    %s502 = sand.u32 %s501, 85
    %s503 = sshrl.u32 %s502, 1
    %s504 = sor.u32 %s502, %s503
    %s505 = sand.u32 51, %s504
    %s506 = sshrl.u32 %s505, 2
    %s507 = sor.u32 %s505, %s506
    %s508 = sand.u32 15, %s507
    %v509 = vld [vmem:[%s0] sm:%s508]
    %v510 = vunpack.c.l.bf16 %v509
    %v511 = vunpack.c.h.bf16 %v509
    %512 = vst [vmem:[#allocation1] sm:%s4] %v510
    %v513 = vld [vmem:[#allocation1] ss:$4 sm:$0xff]
    %vm514 = vcmask 261120
    %515 = vst.msk [vmem:[#allocation0] ss:$8 sm:$0x3] %vm514, %v513
    %s516 = scalar_lea.vmem [#allocation0], 4294967281
    %517 = vst.msk [vmem:[%s516] ss:$8 sm:$0xc] %vm514, %v513
    %s518 = scalar_lea.vmem [#allocation0], 4294967266
    %519 = vst.msk [vmem:[%s518] ss:$8 sm:$0x30] %vm514, %v513
    %s520 = scalar_lea.vmem [#allocation0], 4294967251
    %521 = vst.msk [vmem:[%s520] ss:$8 sm:$0xc0] %vm514, %v513
    %s522 = scalar_lea.vmem [#allocation1], 32
    %v523 = vld [vmem:[%s522] ss:$4 sm:$0xff]
    %vm524 = vcmask 261120
    %s525 = scalar_lea.vmem [#allocation0], 4
    %526 = vst.msk [vmem:[%s525] ss:$8 sm:$0x3] %vm524, %v523
    %s527 = scalar_lea.vmem [#allocation0], 4294967285
    %528 = vst.msk [vmem:[%s527] ss:$8 sm:$0xc] %vm524, %v523
    %s529 = scalar_lea.vmem [#allocation0], 4294967270
    %530 = vst.msk [vmem:[%s529] ss:$8 sm:$0x30] %vm524, %v523
    %s531 = scalar_lea.vmem [#allocation0], 4294967255
    %532 = vst.msk [vmem:[%s531] ss:$8 sm:$0xc0] %vm524, %v523
    %s533 = scalar_lea.vmem [#allocation1], 64
    %v534 = vld [vmem:[%s533] ss:$4 sm:$0xff]
    %vm535 = vcmask 261120
    %s536 = scalar_lea.vmem [#allocation0], 16
    %537 = vst.msk [vmem:[%s536] ss:$8 sm:$0x3] %vm535, %v534
    %s538 = scalar_lea.vmem [#allocation0], 1
    %539 = vst.msk [vmem:[%s538] ss:$8 sm:$0xc] %vm535, %v534
    %s540 = scalar_lea.vmem [#allocation0], 4294967282
    %541 = vst.msk [vmem:[%s540] ss:$8 sm:$0x30] %vm535, %v534
    %s542 = scalar_lea.vmem [#allocation0], 4294967267
    %543 = vst.msk [vmem:[%s542] ss:$8 sm:$0xc0] %vm535, %v534
    %s544 = scalar_lea.vmem [#allocation1], 96
    %v545 = vld [vmem:[%s544] ss:$4 sm:$0xff]
    %vm546 = vcmask 261120
    %s547 = scalar_lea.vmem [#allocation0], 20
    %548 = vst.msk [vmem:[%s547] ss:$8 sm:$0x3] %vm546, %v545
    %s549 = scalar_lea.vmem [#allocation0], 5
    %550 = vst.msk [vmem:[%s549] ss:$8 sm:$0xc] %vm546, %v545
    %s551 = scalar_lea.vmem [#allocation0], 4294967286
    %552 = vst.msk [vmem:[%s551] ss:$8 sm:$0x30] %vm546, %v545
    %s553 = scalar_lea.vmem [#allocation0], 4294967271
    %554 = vst.msk [vmem:[%s553] ss:$8 sm:$0xc0] %vm546, %v545
    %s555 = scalar_lea.vmem [#allocation1], 128
    %v556 = vld [vmem:[%s555] ss:$4 sm:$0xff]
    %vm557 = vcmask 261120
    %s558 = scalar_lea.vmem [#allocation0], 32
    %559 = vst.msk [vmem:[%s558] ss:$8 sm:$0x3] %vm557, %v556
    %s560 = scalar_lea.vmem [#allocation0], 17
    %561 = vst.msk [vmem:[%s560] ss:$8 sm:$0xc] %vm557, %v556
    %s562 = scalar_lea.vmem [#allocation0], 2
    %563 = vst.msk [vmem:[%s562] ss:$8 sm:$0x30] %vm557, %v556
    %s564 = scalar_lea.vmem [#allocation0], 4294967283
    %565 = vst.msk [vmem:[%s564] ss:$8 sm:$0xc0] %vm557, %v556
    %s566 = scalar_lea.vmem [#allocation1], 160
    %v567 = vld [vmem:[%s566] ss:$4 sm:$0xff]
    %vm568 = vcmask 261120
    %s569 = scalar_lea.vmem [#allocation0], 36
    %570 = vst.msk [vmem:[%s569] ss:$8 sm:$0x3] %vm568, %v567
    %s571 = scalar_lea.vmem [#allocation0], 21
    %572 = vst.msk [vmem:[%s571] ss:$8 sm:$0xc] %vm568, %v567
    %s573 = scalar_lea.vmem [#allocation0], 6
    %574 = vst.msk [vmem:[%s573] ss:$8 sm:$0x30] %vm568, %v567
    %s575 = scalar_lea.vmem [#allocation0], 4294967287
    %576 = vst.msk [vmem:[%s575] ss:$8 sm:$0xc0] %vm568, %v567
    %s577 = scalar_lea.vmem [#allocation1], 192
    %v578 = vld [vmem:[%s577] ss:$4 sm:$0xff]
    %vm579 = vcmask 261120
    %s580 = scalar_lea.vmem [#allocation0], 48
    %581 = vst.msk [vmem:[%s580] ss:$8 sm:$0x3] %vm579, %v578
    %s582 = scalar_lea.vmem [#allocation0], 33
    %583 = vst.msk [vmem:[%s582] ss:$8 sm:$0xc] %vm579, %v578
    %s584 = scalar_lea.vmem [#allocation0], 18
    %585 = vst.msk [vmem:[%s584] ss:$8 sm:$0x30] %vm579, %v578
    %s586 = scalar_lea.vmem [#allocation0], 3
    %587 = vst.msk [vmem:[%s586] ss:$8 sm:$0xc0] %vm579, %v578
    %s588 = scalar_lea.vmem [#allocation1], 224
    %v589 = vld [vmem:[%s588] ss:$4 sm:$0xff]
    %vm590 = vcmask 261120
    %s591 = scalar_lea.vmem [#allocation0], 52
    %592 = vst.msk [vmem:[%s591] ss:$8 sm:$0x3] %vm590, %v589
    %s593 = scalar_lea.vmem [#allocation0], 37
    %594 = vst.msk [vmem:[%s593] ss:$8 sm:$0xc] %vm590, %v589
    %s595 = scalar_lea.vmem [#allocation0], 22
    %596 = vst.msk [vmem:[%s595] ss:$8 sm:$0x30] %vm590, %v589
    %s597 = scalar_lea.vmem [#allocation0], 7
    %598 = vst.msk [vmem:[%s597] ss:$8 sm:$0xc0] %vm590, %v589
    %s599 = scalar_lea.vmem [#allocation1], 3
    %v600 = vld [vmem:[%s599] ss:$8 sm:$0xf]
    %s601 = scalar_lea.vmem [#allocation1], 3
    %v602 = vld [vmem:[%s601] ss:$8 sm:$0xf0]
    %vm603 = vcmask 1047556
    %v604 = vsel %vm603, %v602, %v600
    %605 = vrot.lane.b32.xlu0 %v604, 96
    %v606 = vpop.permute.xlu0 %605
    %vm607 = vcmask 1048320
    %608 = vst.msk [vmem:[#allocation0] sm:$0xff] %vm607, %v606
    %s609 = scalar_lea.vmem [#allocation1], 131
    %v610 = vld [vmem:[%s609] ss:$8 sm:$0xf]
    %s611 = scalar_lea.vmem [#allocation1], 131
    %v612 = vld [vmem:[%s611] ss:$8 sm:$0xf0]
    %vm613 = vcmask 1047556
    %v614 = vsel %vm613, %v612, %v610
    %615 = vrot.lane.b32.xlu0 %v614, 96
    %v616 = vpop.permute.xlu0 %615
    %vm617 = vcmask 1048320
    %s618 = scalar_lea.vmem [#allocation0], 32
    %619 = vst.msk [vmem:[%s618] sm:$0xff] %vm617, %v616
    %s620 = scalar_lea.vmem [#allocation1], 7
    %v621 = vld [vmem:[%s620] ss:$8 sm:$0xf]
    %s622 = scalar_lea.vmem [#allocation1], 7
    %v623 = vld [vmem:[%s622] ss:$8 sm:$0xf0]
    %vm624 = vcmask 1047556
    %v625 = vsel %vm624, %v623, %v621
    %626 = vrot.lane.b32.xlu0 %v625, 96
    %v627 = vpop.permute.xlu0 %626
    %vm628 = vcmask 1048320
    %s629 = scalar_lea.vmem [#allocation0], 8
    %630 = vst.msk [vmem:[%s629] sm:$0xff] %vm628, %v627
    %s631 = scalar_lea.vmem [#allocation1], 135
    %v632 = vld [vmem:[%s631] ss:$8 sm:$0xf]
    %s633 = scalar_lea.vmem [#allocation1], 135
    %v634 = vld [vmem:[%s633] ss:$8 sm:$0xf0]
    %vm635 = vcmask 1047556
    %v636 = vsel %vm635, %v634, %v632
    %637 = vrot.lane.b32.xlu0 %v636, 96
    %v638 = vpop.permute.xlu0 %637
    %vm639 = vcmask 1048320
    %s640 = scalar_lea.vmem [#allocation0], 40
    %641 = vst.msk [vmem:[%s640] sm:$0xff] %vm639, %v638
    %s642 = scalar_lea.vmem [#allocation1], 67
    %v643 = vld [vmem:[%s642] ss:$8 sm:$0xf]
    %s644 = scalar_lea.vmem [#allocation1], 67
    %v645 = vld [vmem:[%s644] ss:$8 sm:$0xf0]
    %vm646 = vcmask 1047556
    %v647 = vsel %vm646, %v645, %v643
    %648 = vrot.lane.b32.xlu0 %v647, 96
    %v649 = vpop.permute.xlu0 %648
    %vm650 = vcmask 1048320
    %s651 = scalar_lea.vmem [#allocation0], 16
    %652 = vst.msk [vmem:[%s651] sm:$0xff] %vm650, %v649
    %s653 = scalar_lea.vmem [#allocation1], 195
    %v654 = vld [vmem:[%s653] ss:$8 sm:$0xf]
    %s655 = scalar_lea.vmem [#allocation1], 195
    %v656 = vld [vmem:[%s655] ss:$8 sm:$0xf0]
    %vm657 = vcmask 1047556
    %v658 = vsel %vm657, %v656, %v654
    %659 = vrot.lane.b32.xlu0 %v658, 96
    %v660 = vpop.permute.xlu0 %659
    %vm661 = vcmask 1048320
    %s662 = scalar_lea.vmem [#allocation0], 48
    %663 = vst.msk [vmem:[%s662] sm:$0xff] %vm661, %v660
    %s664 = scalar_lea.vmem [#allocation1], 71
    %v665 = vld [vmem:[%s664] ss:$8 sm:$0xf]
    %s666 = scalar_lea.vmem [#allocation1], 71
    %v667 = vld [vmem:[%s666] ss:$8 sm:$0xf0]
    %vm668 = vcmask 1047556
    %v669 = vsel %vm668, %v667, %v665
    %670 = vrot.lane.b32.xlu0 %v669, 96
    %v671 = vpop.permute.xlu0 %670
    %vm672 = vcmask 1048320
    %s673 = scalar_lea.vmem [#allocation0], 24
    %674 = vst.msk [vmem:[%s673] sm:$0xff] %vm672, %v671
    %s675 = scalar_lea.vmem [#allocation1], 199
    %v676 = vld [vmem:[%s675] ss:$8 sm:$0xf]
    %s677 = scalar_lea.vmem [#allocation1], 199
    %v678 = vld [vmem:[%s677] ss:$8 sm:$0xf0]
    %vm679 = vcmask 1047556
    %v680 = vsel %vm679, %v678, %v676
    %681 = vrot.lane.b32.xlu0 %v680, 96
    %v682 = vpop.permute.xlu0 %681
    %vm683 = vcmask 1048320
    %s684 = scalar_lea.vmem [#allocation0], 56
    %685 = vst.msk [vmem:[%s684] sm:$0xff] %vm683, %v682
    %s686 = scalar_lea.vmem [#allocation1], 2
    %v687 = vld [vmem:[%s686] ss:$8 sm:$0xf]
    %s688 = scalar_lea.vmem [#allocation1], 2
    %v689 = vld [vmem:[%s688] ss:$8 sm:$0xf0]
    %vm690 = vcmask 1047556
    %v691 = vsel %vm690, %v689, %v687
    %692 = vrot.lane.b32.xlu0 %v691, 64
    %v693 = vpop.permute.xlu0 %692
    %vm694 = vcmask 785920
    %695 = vst.msk [vmem:[#allocation0] sm:$0xff] %vm694, %v693
    %s696 = scalar_lea.vmem [#allocation1], 130
    %v697 = vld [vmem:[%s696] ss:$8 sm:$0xf]
    %s698 = scalar_lea.vmem [#allocation1], 130
    %v699 = vld [vmem:[%s698] ss:$8 sm:$0xf0]
    %vm700 = vcmask 1047556
    %v701 = vsel %vm700, %v699, %v697
    %702 = vrot.lane.b32.xlu0 %v701, 64
    %v703 = vpop.permute.xlu0 %702
    %vm704 = vcmask 785920
    %s705 = scalar_lea.vmem [#allocation0], 32
    %706 = vst.msk [vmem:[%s705] sm:$0xff] %vm704, %v703
    %s707 = scalar_lea.vmem [#allocation1], 6
    %v708 = vld [vmem:[%s707] ss:$8 sm:$0xf]
    %s709 = scalar_lea.vmem [#allocation1], 6
    %v710 = vld [vmem:[%s709] ss:$8 sm:$0xf0]
    %vm711 = vcmask 1047556
    %v712 = vsel %vm711, %v710, %v708
    %713 = vrot.lane.b32.xlu0 %v712, 64
    %v714 = vpop.permute.xlu0 %713
    %vm715 = vcmask 785920
    %s716 = scalar_lea.vmem [#allocation0], 8
    %717 = vst.msk [vmem:[%s716] sm:$0xff] %vm715, %v714
    %s718 = scalar_lea.vmem [#allocation1], 134
    %v719 = vld [vmem:[%s718] ss:$8 sm:$0xf]
    %s720 = scalar_lea.vmem [#allocation1], 134
    %v721 = vld [vmem:[%s720] ss:$8 sm:$0xf0]
    %vm722 = vcmask 1047556
    %v723 = vsel %vm722, %v721, %v719
    %724 = vrot.lane.b32.xlu0 %v723, 64
    %v725 = vpop.permute.xlu0 %724
    %vm726 = vcmask 785920
    %s727 = scalar_lea.vmem [#allocation0], 40
    %728 = vst.msk [vmem:[%s727] sm:$0xff] %vm726, %v725
    %s729 = scalar_lea.vmem [#allocation1], 66
    %v730 = vld [vmem:[%s729] ss:$8 sm:$0xf]
    %s731 = scalar_lea.vmem [#allocation1], 66
    %v732 = vld [vmem:[%s731] ss:$8 sm:$0xf0]
    %vm733 = vcmask 1047556
    %v734 = vsel %vm733, %v732, %v730
    %735 = vrot.lane.b32.xlu0 %v734, 64
    %v736 = vpop.permute.xlu0 %735
    %vm737 = vcmask 785920
    %s738 = scalar_lea.vmem [#allocation0], 16
    %739 = vst.msk [vmem:[%s738] sm:$0xff] %vm737, %v736
    %s740 = scalar_lea.vmem [#allocation1], 194
    %v741 = vld [vmem:[%s740] ss:$8 sm:$0xf]
    %s742 = scalar_lea.vmem [#allocation1], 194
    %v743 = vld [vmem:[%s742] ss:$8 sm:$0xf0]
    %vm744 = vcmask 1047556
    %v745 = vsel %vm744, %v743, %v741
    %746 = vrot.lane.b32.xlu0 %v745, 64
    %v747 = vpop.permute.xlu0 %746
    %vm748 = vcmask 785920
    %s749 = scalar_lea.vmem [#allocation0], 48
    %750 = vst.msk [vmem:[%s749] sm:$0xff] %vm748, %v747
    %s751 = scalar_lea.vmem [#allocation1], 70
    %v752 = vld [vmem:[%s751] ss:$8 sm:$0xf]
    %s753 = scalar_lea.vmem [#allocation1], 70
    %v754 = vld [vmem:[%s753] ss:$8 sm:$0xf0]
    %vm755 = vcmask 1047556
    %v756 = vsel %vm755, %v754, %v752
    %757 = vrot.lane.b32.xlu0 %v756, 64
    %v758 = vpop.permute.xlu0 %757
    %vm759 = vcmask 785920
    %s760 = scalar_lea.vmem [#allocation0], 24
    %761 = vst.msk [vmem:[%s760] sm:$0xff] %vm759, %v758
    %s762 = scalar_lea.vmem [#allocation1], 198
    %v763 = vld [vmem:[%s762] ss:$8 sm:$0xf]
    %s764 = scalar_lea.vmem [#allocation1], 198
    %v765 = vld [vmem:[%s764] ss:$8 sm:$0xf0]
    %vm766 = vcmask 1047556
    %v767 = vsel %vm766, %v765, %v763
    %768 = vrot.lane.b32.xlu0 %v767, 64
    %v769 = vpop.permute.xlu0 %768
    %vm770 = vcmask 785920
    %s771 = scalar_lea.vmem [#allocation0], 56
    %772 = vst.msk [vmem:[%s771] sm:$0xff] %vm770, %v769
    %s773 = scalar_lea.vmem [#allocation1], 1
    %v774 = vld [vmem:[%s773] ss:$8 sm:$0xf]
    %s775 = scalar_lea.vmem [#allocation1], 1
    %v776 = vld [vmem:[%s775] ss:$8 sm:$0xf0]
    %vm777 = vcmask 1047556
    %v778 = vsel %vm777, %v776, %v774
    %779 = vrot.lane.b32.xlu0 %v778, 32
    %v780 = vpop.permute.xlu0 %779
    %vm781 = vcmask 523520
    %782 = vst.msk [vmem:[#allocation0] sm:$0xff] %vm781, %v780
    %s783 = scalar_lea.vmem [#allocation1], 129
    %v784 = vld [vmem:[%s783] ss:$8 sm:$0xf]
    %s785 = scalar_lea.vmem [#allocation1], 129
    %v786 = vld [vmem:[%s785] ss:$8 sm:$0xf0]
    %vm787 = vcmask 1047556
    %v788 = vsel %vm787, %v786, %v784
    %789 = vrot.lane.b32.xlu0 %v788, 32
    %v790 = vpop.permute.xlu0 %789
    %vm791 = vcmask 523520
    %s792 = scalar_lea.vmem [#allocation0], 32
    %793 = vst.msk [vmem:[%s792] sm:$0xff] %vm791, %v790
    %s794 = scalar_lea.vmem [#allocation1], 5
    %v795 = vld [vmem:[%s794] ss:$8 sm:$0xf]
    %s796 = scalar_lea.vmem [#allocation1], 5
    %v797 = vld [vmem:[%s796] ss:$8 sm:$0xf0]
    %vm798 = vcmask 1047556
    %v799 = vsel %vm798, %v797, %v795
    %800 = vrot.lane.b32.xlu0 %v799, 32
    %v801 = vpop.permute.xlu0 %800
    %vm802 = vcmask 523520
    %s803 = scalar_lea.vmem [#allocation0], 8
    %804 = vst.msk [vmem:[%s803] sm:$0xff] %vm802, %v801
    %s805 = scalar_lea.vmem [#allocation1], 133
    %v806 = vld [vmem:[%s805] ss:$8 sm:$0xf]
    %s807 = scalar_lea.vmem [#allocation1], 133
    %v808 = vld [vmem:[%s807] ss:$8 sm:$0xf0]
    %vm809 = vcmask 1047556
    %v810 = vsel %vm809, %v808, %v806
    %811 = vrot.lane.b32.xlu0 %v810, 32
    %v812 = vpop.permute.xlu0 %811
    %vm813 = vcmask 523520
    %s814 = scalar_lea.vmem [#allocation0], 40
    %815 = vst.msk [vmem:[%s814] sm:$0xff] %vm813, %v812
    %s816 = scalar_lea.vmem [#allocation1], 65
    %v817 = vld [vmem:[%s816] ss:$8 sm:$0xf]
    %s818 = scalar_lea.vmem [#allocation1], 65
    %v819 = vld [vmem:[%s818] ss:$8 sm:$0xf0]
    %vm820 = vcmask 1047556
    %v821 = vsel %vm820, %v819, %v817
    %822 = vrot.lane.b32.xlu0 %v821, 32
    %v823 = vpop.permute.xlu0 %822
    %vm824 = vcmask 523520
    %s825 = scalar_lea.vmem [#allocation0], 16
    %826 = vst.msk [vmem:[%s825] sm:$0xff] %vm824, %v823
    %s827 = scalar_lea.vmem [#allocation1], 193
    %v828 = vld [vmem:[%s827] ss:$8 sm:$0xf]
    %s829 = scalar_lea.vmem [#allocation1], 193
    %v830 = vld [vmem:[%s829] ss:$8 sm:$0xf0]
    %vm831 = vcmask 1047556
    %v832 = vsel %vm831, %v830, %v828
    %833 = vrot.lane.b32.xlu0 %v832, 32
    %v834 = vpop.permute.xlu0 %833
    %vm835 = vcmask 523520
    %s836 = scalar_lea.vmem [#allocation0], 48
    %837 = vst.msk [vmem:[%s836] sm:$0xff] %vm835, %v834
    %s838 = scalar_lea.vmem [#allocation1], 69
    %v839 = vld [vmem:[%s838] ss:$8 sm:$0xf]
    %s840 = scalar_lea.vmem [#allocation1], 69
    %v841 = vld [vmem:[%s840] ss:$8 sm:$0xf0]
    %vm842 = vcmask 1047556
    %v843 = vsel %vm842, %v841, %v839
    %844 = vrot.lane.b32.xlu0 %v843, 32
    %v845 = vpop.permute.xlu0 %844
    %vm846 = vcmask 523520
    %s847 = scalar_lea.vmem [#allocation0], 24
    %848 = vst.msk [vmem:[%s847] sm:$0xff] %vm846, %v845
    %s849 = scalar_lea.vmem [#allocation1], 197
    %v850 = vld [vmem:[%s849] ss:$8 sm:$0xf]
    %s851 = scalar_lea.vmem [#allocation1], 197
    %v852 = vld [vmem:[%s851] ss:$8 sm:$0xf0]
    %vm853 = vcmask 1047556
    %v854 = vsel %vm853, %v852, %v850
    %855 = vrot.lane.b32.xlu0 %v854, 32
    %v856 = vpop.permute.xlu0 %855
    %vm857 = vcmask 523520
    %s858 = scalar_lea.vmem [#allocation0], 56
    %859 = vst.msk [vmem:[%s858] sm:$0xff] %vm857, %v856
    %s861 = smul.u32 4, 2
    %s862 = sshllo.u32 0, %s861
    %s863 = sshrl.u32 %s861, 1
    %v864 = vld [vmem:[#allocation0] sm:%s862]
    %v865 = vpack.c.bf16 0.0, %v864
    %s866 = sshllo.u32 0, %s863
    %867 = vst [vmem:[%s1] sm:%s866] %v865
    %s868 = scalar_lea.vmem [#allocation0], 8
    %v869 = vld [vmem:[%s868] sm:%s862]
    %v870 = vpack.c.bf16 0.0, %v869
    %s871 = sshllo.u32 0, %s863
    %s872 = scalar_lea.vmem %s1, 4
    %873 = vst [vmem:[%s872] sm:%s871] %v870
    %s874 = scalar_lea.vmem [#allocation0], 16
    %v875 = vld [vmem:[%s874] sm:%s862]
    %v876 = vpack.c.bf16 0.0, %v875
    %s877 = sshllo.u32 0, %s863
    %s878 = smul.addr 4, 2
    %s879 = scalar_lea.vmem %s1, %s878
    %880 = vst [vmem:[%s879] sm:%s877] %v876
    %s881 = scalar_lea.vmem [#allocation0], 24
    %v882 = vld [vmem:[%s881] sm:%s862]
    %v883 = vpack.c.bf16 0.0, %v882
    %s884 = sshllo.u32 0, %s863
    %s885 = smul.addr 4, 3
    %s886 = scalar_lea.vmem %s1, %s885
    %887 = vst [vmem:[%s886] sm:%s884] %v883
    %s888 = scalar_lea.vmem [#allocation0], 32
    %v889 = vld [vmem:[%s888] sm:%s862]
    %v890 = vpack.c.bf16 0.0, %v889
    %s891 = sshllo.u32 0, %s863
    %s892 = smul.addr 4, 4
    %s893 = scalar_lea.vmem %s1, %s892
    %894 = vst [vmem:[%s893] sm:%s891] %v890
    %s895 = scalar_lea.vmem [#allocation0], 40
    %v896 = vld [vmem:[%s895] sm:%s862]
    %v897 = vpack.c.bf16 0.0, %v896
    %s898 = sshllo.u32 0, %s863
    %s899 = smul.addr 4, 5
    %s900 = scalar_lea.vmem %s1, %s899
    %901 = vst [vmem:[%s900] sm:%s898] %v897
    %s902 = scalar_lea.vmem [#allocation0], 48
    %v903 = vld [vmem:[%s902] sm:%s862]
    %v904 = vpack.c.bf16 0.0, %v903
    %s905 = sshllo.u32 0, %s863
    %s906 = smul.addr 4, 6
    %s907 = scalar_lea.vmem %s1, %s906
    %908 = vst [vmem:[%s907] sm:%s905] %v904
    %s909 = scalar_lea.vmem [#allocation0], 56
    %v910 = vld [vmem:[%s909] sm:%s862]
    %v911 = vpack.c.bf16 0.0, %v910
    %s912 = sshllo.u32 0, %s863
    %s913 = smul.addr 4, 7
    %s914 = scalar_lea.vmem %s1, %s913
    %915 = vst [vmem:[%s914] sm:%s912] %v911

// kernel: temporal_gnn_forward.1
$region0: #{temporal_gnn_forward.1}
  #allocation0 [shape = 'u32[]', space=smem, size = 0x4, offset = 0x4, fixed_abs, tag = 'smem constant byte address 0x4 - core index']
  #allocation1 [shape = 'u32[144,128]{1,0:T(1,128)}', space=vmem, size = 0x12000, scoped, tag = 'internal scratch']
  %s0 = inlined_call_operand.vmem [shape: bf16[2,16,32], index: 0, kind: input, shape index: {}]
  %s1 = inlined_call_operand.vmem [shape: f32[2,16,32], index: 1, kind: input, shape index: {}]
  %s2 = inlined_call_operand.vmem [shape: bf16[16,16], index: 2, kind: input, shape index: {}]
  %s3 = inlined_call_operand.vmem [shape: bf16[32,768], index: 3, kind: input, shape index: {}]
  %s4 = inlined_call_operand.vmem [shape: f32[1,768], index: 4, kind: input, shape index: {}]
  %s5 = inlined_call_operand.vmem [shape: bf16[32,512], index: 5, kind: input, shape index: {}]
  %s6 = inlined_call_operand.vmem [shape: bf16[256,256], index: 6, kind: input, shape index: {}]
  %s7 = inlined_call_operand.vmem [shape: bf16[256,32], index: 7, kind: input, shape index: {}]
  %s8 = inlined_call_operand.vmem [shape: bf16[32,8], index: 8, kind: input, shape index: {}]
  %s9 = inlined_call_operand.vmem [shape: f32[1,8], index: 9, kind: input, shape index: {}]
  %s10 = inlined_call_operand.vmem [shape: f32[2,16,8], index: 10, kind: output, shape index: {}]
  %s11 = sld [smem:[#allocation0]]
  $region73: #{temporal_gnn_forward.1} parent=0
    _
  %s13 = ssub.s32 1, %s11
  %s14 = scalar_select 0, %s13, %s11
  loop: start=0, step=1, limit=4
  $region2: #{temporal_gnn_forward.1} parent=0 // loop_pre_header
    _
  $region3: #{temporal_gnn_forward.1} parent=0 // loop_header
    %s16 = sphi 0, %s20
    %p17 = scmp.ge.s32.totalorder %s16, 4
    %s26 = sphi 0, %s28
    %s29 = sphi 0, %s26
    %s30 = sphi 0, %s29
    %s46 = sphi 0, %s30
    %s52 = sphi 0, %s54
    %s55 = sphi 0, %s52
    %s56 = sphi 0, %s55
    %s72 = sphi 0, %s56
    %s76 = sphi 0, %s76
    %s78 = sphi 0, %s76
    %s79 = sphi 0, %s78
    %s93 = sphi 0, %s79
    %s97 = sphi 0, %s97
    %s99 = sphi 0, %s97
    %s100 = sphi 0, %s99
    %s114 = sphi 0, %s100
    %s118 = sphi 0, %s118
    %s120 = sphi 0, %s118
    %s121 = sphi 0, %s120
    %s135 = sphi 0, %s121
    %s139 = sphi 0, %s139
    %s141 = sphi 0, %s139
    %s142 = sphi 0, %s141
    %s156 = sphi 0, %s142
    %s160 = sphi 0, %s160
    %s162 = sphi 0, %s160
    %s163 = sphi 0, %s162
    %s177 = sphi 0, %s163
    %s181 = sphi 0, %s181
    %s183 = sphi 0, %s181
    %s184 = sphi 0, %s183
    %s198 = sphi 0, %s184
    %s202 = sphi 0, %s202
    %s204 = sphi 0, %s202
    %s205 = sphi 0, %s204
    %s219 = sphi 0, %s205
    %s223 = sphi 0, %s223
    %s225 = sphi 0, %s223
    %s226 = sphi 0, %s225
    %s240 = sphi 0, %s226
    %s246 = sphi 0, %s248
    %s249 = sphi 0, %s246
    %s250 = sphi 0, %s249
    %s266 = sphi 0, %s250
  $region4: #{temporal_gnn_forward.1} parent=0 // loop_header_branch
    %19 = sbr.rel (%p17) target = $region8
  $region5: #{temporal_gnn_forward.1} parent=0 // loop_body
    %s21 = ssub.s32 %s16, 1
    %s22 = ssub.s32 %s16, 2
    %s23 = sadd.s32 %s16, 1
    %s24 = ssub.s32 %s16, %s23
    %p25 = scmp.eq.s32.totalorder %s24, 0
    %s27 = sadd.s32 %s26, 1
    %s28 = scalar_select %p25, %s26, %s27
    %p31 = pneg %p25
    %p32 = scmp.eq.s32.totalorder %s16, 1
    %p33 = por %p31, %p32
    %p34 = scmp.ne.s32.totalorder %s26, %s29
    %p35 = scmp.eq.s32.totalorder %s16, 0
    %p36 = por %p34, %p35
    %p37 = scmp.ne.s32.totalorder %s26, %s29
    %p38 = scmp.eq.s32.totalorder %s21, 1
    %p39 = por %p37, %p38
    %p40 = scmp.ne.s32.totalorder %s29, %s30
    %p41 = scmp.eq.s32.totalorder %s21, 0
    %p42 = por %p40, %p41
    %p43 = scmp.ne.s32.totalorder %s29, %s30
    %p44 = scmp.eq.s32.totalorder %s22, 1
    %p45 = por %p43, %p44
    %p47 = scmp.ne.s32.totalorder %s30, %s46
    %p48 = scmp.eq.s32.totalorder %s22, 0
    %p49 = por %p47, %p48
    %s50 = ssub.s32 %s16, %s23
    %p51 = scmp.eq.s32.totalorder %s50, 0
    %s53 = sadd.s32 %s52, 1
    %s54 = scalar_select %p51, %s52, %s53
    %p57 = pneg %p51
    %p58 = scmp.eq.s32.totalorder %s16, 1
    %p59 = por %p57, %p58
    %p60 = scmp.ne.s32.totalorder %s52, %s55
    %p61 = scmp.eq.s32.totalorder %s16, 0
    %p62 = por %p60, %p61
    %p63 = scmp.ne.s32.totalorder %s52, %s55
    %p64 = scmp.eq.s32.totalorder %s21, 1
    %p65 = por %p63, %p64
    %p66 = scmp.ne.s32.totalorder %s55, %s56
    %p67 = scmp.eq.s32.totalorder %s21, 0
    %p68 = por %p66, %p67
    %p69 = scmp.ne.s32.totalorder %s55, %s56
    %p70 = scmp.eq.s32.totalorder %s22, 1
    %p71 = por %p69, %p70
    %p73 = scmp.ne.s32.totalorder %s56, %s72
    %p74 = scmp.eq.s32.totalorder %s22, 0
    %p75 = por %p73, %p74
    %s77 = sadd.s32 %s76, 1
    %p80 = scmp.eq.s32.totalorder %s16, 1
    %p81 = scmp.ne.s32.totalorder %s76, %s78
    %p82 = scmp.eq.s32.totalorder %s16, 0
    %p83 = por %p81, %p82
    %p84 = scmp.ne.s32.totalorder %s76, %s78
    %p85 = scmp.eq.s32.totalorder %s21, 1
    %p86 = por %p84, %p85
    %p87 = scmp.ne.s32.totalorder %s78, %s79
    %p88 = scmp.eq.s32.totalorder %s21, 0
    %p89 = por %p87, %p88
    %p90 = scmp.ne.s32.totalorder %s78, %s79
    %p91 = scmp.eq.s32.totalorder %s22, 1
    %p92 = por %p90, %p91
    %p94 = scmp.ne.s32.totalorder %s79, %s93
    %p95 = scmp.eq.s32.totalorder %s22, 0
    %p96 = por %p94, %p95
    %s98 = sadd.s32 %s97, 1
    %p101 = scmp.eq.s32.totalorder %s16, 1
    %p102 = scmp.ne.s32.totalorder %s97, %s99
    %p103 = scmp.eq.s32.totalorder %s16, 0
    %p104 = por %p102, %p103
    %p105 = scmp.ne.s32.totalorder %s97, %s99
    %p106 = scmp.eq.s32.totalorder %s21, 1
    %p107 = por %p105, %p106
    %p108 = scmp.ne.s32.totalorder %s99, %s100
    %p109 = scmp.eq.s32.totalorder %s21, 0
    %p110 = por %p108, %p109
    %p111 = scmp.ne.s32.totalorder %s99, %s100
    %p112 = scmp.eq.s32.totalorder %s22, 1
    %p113 = por %p111, %p112
    %p115 = scmp.ne.s32.totalorder %s100, %s114
    %p116 = scmp.eq.s32.totalorder %s22, 0
    %p117 = por %p115, %p116
    %s119 = sadd.s32 %s118, 1
    %p122 = scmp.eq.s32.totalorder %s16, 1
    %p123 = scmp.ne.s32.totalorder %s118, %s120
    %p124 = scmp.eq.s32.totalorder %s16, 0
    %p125 = por %p123, %p124
    %p126 = scmp.ne.s32.totalorder %s118, %s120
    %p127 = scmp.eq.s32.totalorder %s21, 1
    %p128 = por %p126, %p127
    %p129 = scmp.ne.s32.totalorder %s120, %s121
    %p130 = scmp.eq.s32.totalorder %s21, 0
    %p131 = por %p129, %p130
    %p132 = scmp.ne.s32.totalorder %s120, %s121
    %p133 = scmp.eq.s32.totalorder %s22, 1
    %p134 = por %p132, %p133
    %p136 = scmp.ne.s32.totalorder %s121, %s135
    %p137 = scmp.eq.s32.totalorder %s22, 0
    %p138 = por %p136, %p137
    %s140 = sadd.s32 %s139, 1
    %p143 = scmp.eq.s32.totalorder %s16, 1
    %p144 = scmp.ne.s32.totalorder %s139, %s141
    %p145 = scmp.eq.s32.totalorder %s16, 0
    %p146 = por %p144, %p145
    %p147 = scmp.ne.s32.totalorder %s139, %s141
    %p148 = scmp.eq.s32.totalorder %s21, 1
    %p149 = por %p147, %p148
    %p150 = scmp.ne.s32.totalorder %s141, %s142
    %p151 = scmp.eq.s32.totalorder %s21, 0
    %p152 = por %p150, %p151
    %p153 = scmp.ne.s32.totalorder %s141, %s142
    %p154 = scmp.eq.s32.totalorder %s22, 1
    %p155 = por %p153, %p154
    %p157 = scmp.ne.s32.totalorder %s142, %s156
    %p158 = scmp.eq.s32.totalorder %s22, 0
    %p159 = por %p157, %p158
    %s161 = sadd.s32 %s160, 1
    %p164 = scmp.eq.s32.totalorder %s16, 1
    %p165 = scmp.ne.s32.totalorder %s160, %s162
    %p166 = scmp.eq.s32.totalorder %s16, 0
    %p167 = por %p165, %p166
    %p168 = scmp.ne.s32.totalorder %s160, %s162
    %p169 = scmp.eq.s32.totalorder %s21, 1
    %p170 = por %p168, %p169
    %p171 = scmp.ne.s32.totalorder %s162, %s163
    %p172 = scmp.eq.s32.totalorder %s21, 0
    %p173 = por %p171, %p172
    %p174 = scmp.ne.s32.totalorder %s162, %s163
    %p175 = scmp.eq.s32.totalorder %s22, 1
    %p176 = por %p174, %p175
    %p178 = scmp.ne.s32.totalorder %s163, %s177
    %p179 = scmp.eq.s32.totalorder %s22, 0
    %p180 = por %p178, %p179
    %s182 = sadd.s32 %s181, 1
    %p185 = scmp.eq.s32.totalorder %s16, 1
    %p186 = scmp.ne.s32.totalorder %s181, %s183
    %p187 = scmp.eq.s32.totalorder %s16, 0
    %p188 = por %p186, %p187
    %p189 = scmp.ne.s32.totalorder %s181, %s183
    %p190 = scmp.eq.s32.totalorder %s21, 1
    %p191 = por %p189, %p190
    %p192 = scmp.ne.s32.totalorder %s183, %s184
    %p193 = scmp.eq.s32.totalorder %s21, 0
    %p194 = por %p192, %p193
    %p195 = scmp.ne.s32.totalorder %s183, %s184
    %p196 = scmp.eq.s32.totalorder %s22, 1
    %p197 = por %p195, %p196
    %p199 = scmp.ne.s32.totalorder %s184, %s198
    %p200 = scmp.eq.s32.totalorder %s22, 0
    %p201 = por %p199, %p200
    %s203 = sadd.s32 %s202, 1
    %p206 = scmp.eq.s32.totalorder %s16, 1
    %p207 = scmp.ne.s32.totalorder %s202, %s204
    %p208 = scmp.eq.s32.totalorder %s16, 0
    %p209 = por %p207, %p208
    %p210 = scmp.ne.s32.totalorder %s202, %s204
    %p211 = scmp.eq.s32.totalorder %s21, 1
    %p212 = por %p210, %p211
    %p213 = scmp.ne.s32.totalorder %s204, %s205
    %p214 = scmp.eq.s32.totalorder %s21, 0
    %p215 = por %p213, %p214
    %p216 = scmp.ne.s32.totalorder %s204, %s205
    %p217 = scmp.eq.s32.totalorder %s22, 1
    %p218 = por %p216, %p217
    %p220 = scmp.ne.s32.totalorder %s205, %s219
    %p221 = scmp.eq.s32.totalorder %s22, 0
    %p222 = por %p220, %p221
    %s224 = sadd.s32 %s223, 1
    %p227 = scmp.eq.s32.totalorder %s16, 1
    %p228 = scmp.ne.s32.totalorder %s223, %s225
    %p229 = scmp.eq.s32.totalorder %s16, 0
    %p230 = por %p228, %p229
    %p231 = scmp.ne.s32.totalorder %s223, %s225
    %p232 = scmp.eq.s32.totalorder %s21, 1
    %p233 = por %p231, %p232
    %p234 = scmp.ne.s32.totalorder %s225, %s226
    %p235 = scmp.eq.s32.totalorder %s21, 0
    %p236 = por %p234, %p235
    %p237 = scmp.ne.s32.totalorder %s225, %s226
    %p238 = scmp.eq.s32.totalorder %s22, 1
    %p239 = por %p237, %p238
    %p241 = scmp.ne.s32.totalorder %s226, %s240
    %p242 = scmp.eq.s32.totalorder %s22, 0
    %p243 = por %p241, %p242
    %s244 = ssub.s32 %s16, %s23
    %p245 = scmp.eq.s32.totalorder %s244, 0
    %s247 = sadd.s32 %s246, 1
    %s248 = scalar_select %p245, %s246, %s247
    %p251 = pneg %p245
    %p252 = scmp.eq.s32.totalorder %s16, 1
    %p253 = por %p251, %p252
    %p254 = scmp.ne.s32.totalorder %s246, %s249
    %p255 = scmp.eq.s32.totalorder %s16, 0
    %p256 = por %p254, %p255
    %p257 = scmp.ne.s32.totalorder %s246, %s249
    %p258 = scmp.eq.s32.totalorder %s21, 1
    %p259 = por %p257, %p258
    %p260 = scmp.ne.s32.totalorder %s249, %s250
    %p261 = scmp.eq.s32.totalorder %s21, 0
    %p262 = por %p260, %p261
    %p263 = scmp.ne.s32.totalorder %s249, %s250
    %p264 = scmp.eq.s32.totalorder %s22, 1
    %p265 = por %p263, %p264
    %p267 = scmp.ne.s32.totalorder %s250, %s266
    %p268 = scmp.eq.s32.totalorder %s22, 0
    %p269 = por %p267, %p268
    %p270 = scmp.le.s32.totalorder 1, %s16
    %p271 = scmp.lt.s32.totalorder %s16, 3
    %p272 = pnand %p270, %p271
    %p273 = pneg %p272
    // Predicated region
    $region9: #{temporal_gnn_forward.1} parent=5 // pred_check
      _
    $region10: #{temporal_gnn_forward.1} parent=5 // pred_check_branch
      %275 = sbr.rel (%p272) target = $region12
    $region11: #{temporal_gnn_forward.1} parent=5 // pred_region
      %s276 = ssub.s32 %s16, 1
      // Predicated region
      $region13: #{temporal_gnn_forward.1} parent=11 // pred_check
        %p277 = pneg %p89
      $region14: #{temporal_gnn_forward.1} parent=11 // pred_check_branch
        %279 = sbr.rel (%p277) target = $region16
      $region15: #{temporal_gnn_forward.1} parent=11 // pred_region
        _
      $region16: #{temporal_gnn_forward.1} parent=11 // pred_fallthru
        _
      // Predicated region
      $region17: #{temporal_gnn_forward.1} parent=11 // pred_check
        %p280 = pneg %p110
      $region18: #{temporal_gnn_forward.1} parent=11 // pred_check_branch
        %282 = sbr.rel (%p280) target = $region20
      $region19: #{temporal_gnn_forward.1} parent=11 // pred_region
        _
      $region20: #{temporal_gnn_forward.1} parent=11 // pred_fallthru
        _
      // Predicated region
      $region21: #{temporal_gnn_forward.1} parent=11 // pred_check
        %p283 = pneg %p131
      $region22: #{temporal_gnn_forward.1} parent=11 // pred_check_branch
        %285 = sbr.rel (%p283) target = $region24
      $region23: #{temporal_gnn_forward.1} parent=11 // pred_region
        _
      $region24: #{temporal_gnn_forward.1} parent=11 // pred_fallthru
        _
      // Predicated region
      $region25: #{temporal_gnn_forward.1} parent=11 // pred_check
        %p286 = pneg %p152
      $region26: #{temporal_gnn_forward.1} parent=11 // pred_check_branch
        %288 = sbr.rel (%p286) target = $region28
      $region27: #{temporal_gnn_forward.1} parent=11 // pred_region
        _
      $region28: #{temporal_gnn_forward.1} parent=11 // pred_fallthru
        _
      // Predicated region
      $region29: #{temporal_gnn_forward.1} parent=11 // pred_check
        %p289 = pneg %p173
      $region30: #{temporal_gnn_forward.1} parent=11 // pred_check_branch
        %291 = sbr.rel (%p289) target = $region32
      $region31: #{temporal_gnn_forward.1} parent=11 // pred_region
        _
      $region32: #{temporal_gnn_forward.1} parent=11 // pred_fallthru
        _
      // Predicated region
      $region33: #{temporal_gnn_forward.1} parent=11 // pred_check
        %p292 = pneg %p194
      $region34: #{temporal_gnn_forward.1} parent=11 // pred_check_branch
        %294 = sbr.rel (%p292) target = $region36
      $region35: #{temporal_gnn_forward.1} parent=11 // pred_region
        _
      $region36: #{temporal_gnn_forward.1} parent=11 // pred_fallthru
        _
      // Predicated region
      $region37: #{temporal_gnn_forward.1} parent=11 // pred_check
        %p295 = pneg %p215
      $region38: #{temporal_gnn_forward.1} parent=11 // pred_check_branch
        %297 = sbr.rel (%p295) target = $region40
      $region39: #{temporal_gnn_forward.1} parent=11 // pred_region
        _
      $region40: #{temporal_gnn_forward.1} parent=11 // pred_fallthru
        _
      // Predicated region
      $region41: #{temporal_gnn_forward.1} parent=11 // pred_check
        %p298 = pneg %p236
      $region42: #{temporal_gnn_forward.1} parent=11 // pred_check_branch
        %300 = sbr.rel (%p298) target = $region44
      $region43: #{temporal_gnn_forward.1} parent=11 // pred_region
        _
      $region44: #{temporal_gnn_forward.1} parent=11 // pred_fallthru
        _
    $region12: #{temporal_gnn_forward.1} parent=5 // pred_fallthru
      _
    %p301 = scmp.lt.s32.totalorder %s16, 2
    // Predicated region
    $region45: #{temporal_gnn_forward.1} parent=5 // pred_check
      %p302 = pneg %p301
    $region46: #{temporal_gnn_forward.1} parent=5 // pred_check_branch
      %304 = sbr.rel (%p302) target = $region48
    $region47: #{temporal_gnn_forward.1} parent=5 // pred_region
      // Predicated region
      $region49: #{temporal_gnn_forward.1} parent=47 // pred_check
        %p305 = pneg %p36
      $region50: #{temporal_gnn_forward.1} parent=47 // pred_check_branch
        %307 = sbr.rel (%p305) target = $region52
      $region51: #{temporal_gnn_forward.1} parent=47 // pred_region
        %p308 = scmp.lt.s32.totalorder %s16, 1
        %s309 = scalar_select %p308, %s16, 1
        %s310 = smul.addr %s309, 2
        %s311 = smul.addr %s310, 4
        %s312 = scalar_lea.vmem %s0, %s311
      $region52: #{temporal_gnn_forward.1} parent=47 // pred_fallthru
        _
      // Predicated region
      $region53: #{temporal_gnn_forward.1} parent=47 // pred_check
        %p313 = pneg %p62
      $region54: #{temporal_gnn_forward.1} parent=47 // pred_check_branch
        %315 = sbr.rel (%p313) target = $region56
      $region55: #{temporal_gnn_forward.1} parent=47 // pred_region
        %p316 = scmp.lt.s32.totalorder %s16, 1
        %s317 = scalar_select %p316, %s16, 1
        %s318 = smul.addr %s317, 2
        %s319 = smul.addr %s318, 8
        %s320 = scalar_lea.vmem %s1, %s319
      $region56: #{temporal_gnn_forward.1} parent=47 // pred_fallthru
        _
    $region48: #{temporal_gnn_forward.1} parent=5 // pred_fallthru
      _
    %p321 = scmp.le.s32.totalorder 1, %s16
    %p322 = scmp.lt.s32.totalorder %s16, 3
    %p323 = pnand %p321, %p322
    %p324 = pneg %p323
    // Predicated region
    $region57: #{temporal_gnn_forward.1} parent=5 // pred_check
      _
    $region58: #{temporal_gnn_forward.1} parent=5 // pred_check_branch
      %326 = sbr.rel (%p323) target = $region60
    $region59: #{temporal_gnn_forward.1} parent=5 // pred_region
      %s327 = ssub.s32 %s16, 1
      %p328 = scmp.lt.s32.totalorder %s21, 1
      %s329 = scalar_select %p328, %s21, 1
      %s330 = smul.addr %s329, 2
      %s331 = smul.addr %s330, 4
      %s332 = scalar_lea.vmem %s0, %s331
      %p333 = pneg %p42
      %p334 = pneg %p39
      %p335 = scmp.lt.s32.totalorder %s21, 1
      %s336 = scalar_select %p335, %s21, 1
      %s337 = smul.addr %s336, 2
      %s338 = smul.addr %s337, 8
      %s339 = scalar_lea.vmem %s1, %s338
      %p340 = pneg %p68
      %p341 = pneg %p65
      %p342 = pneg %p89
      %p343 = pneg %p86
      %p344 = pneg %p110
      %p345 = pneg %p107
      %p346 = pneg %p131
      %p347 = pneg %p128
      %p348 = pneg %p152
      %p349 = pneg %p149
      %p350 = pneg %p173
      %p351 = pneg %p170
      %p352 = pneg %p194
      %p353 = pneg %p191
      %p354 = pneg %p215
      %p355 = pneg %p212
      %p356 = pneg %p236
      %p357 = pneg %p233
      %p358 = pneg %p262
      %p359 = pneg %p259
      %p360 = scmp.lt.s32.totalorder %s21, 1
      %s361 = scalar_select %p360, %s21, 1
      %s362 = smul.addr %s361, 2
      %s363 = smul.addr %s362, 8
      %s364 = scalar_lea.vmem %s10, %s363
      %p365 = scmp.lt.s32.totalorder %s21, 1
      %s366 = scalar_select %p365, %s21, 1
      %s367 = smul.addr %s366, 2
      %s368 = smul.addr %s367, 4
      %s369 = scalar_lea.vmem %s0, %s368
      %p370 = scmp.lt.s32.totalorder %s21, 1
      %s371 = scalar_select %p370, %s21, 1
      %s372 = smul.addr %s371, 2
      %s373 = smul.addr %s372, 8
      %s374 = scalar_lea.vmem %s1, %s373
      %p375 = scmp.lt.s32.totalorder %s21, 1
      %s376 = scalar_select %p375, %s21, 1
      %s377 = smul.addr %s376, 2
      %s378 = smul.addr %s377, 8
      %s379 = scalar_lea.vmem %s10, %s378
      %v381 = vld [vmem:[%s369] sm:$0xf]
      %v382 = vld [vmem:[%s369 + $0x4] sm:$0xf]
      %v383 = vld [vmem:[%s374] sm:$0xff]
      %v384 = vld [vmem:[%s374 + $0x8] sm:$0xff]
      %v385 = vld [vmem:[%s2] sm:$0xf]
      %v386 = vld [vmem:[%s2 + $0x4] sm:$0xf]
      %v389 = vunpack.c.l.b16 %v385
      %v390 = vunpack.c.l.b16 %v386
      %v391 = vpack.c.b16 %v390, %v389
      %v394 = vunpack.c.l.b16 %v381
      %v395 = vunpack.c.l.b16 %v382
      %v396 = vpack.c.b16 %v395, %v394
      %vm398 = vcmask 130048
      %v400 = vsel %vm398, %v391, 0
      %402 = vmatprep.subr.bf16.mxu0 0
      %403 = vmatpush1.bf16.msra.mxu0 %v396
      %404 = vmatprep.subr.bf16.mxu0 0
      %405 = vmatpush1.bf16.msra.mxu0 0
      %406 = vmatprep.subr.bf16.mxu0 0
      %407 = vmatpush1.bf16.msra.mxu0 0
      %408 = vmatprep.subr.bf16.mxu0 0
      %409 = vmatpush1.bf16.msra.mxu0 0
      %410 = vmatprep.subr.bf16.mxu0 0
      %411 = vmatpush1.bf16.msra.mxu0 0
      %412 = vmatprep.subr.bf16.mxu0 0
      %413 = vmatpush1.bf16.msra.mxu0 0
      %414 = vmatprep.subr.bf16.mxu0 0
      %415 = vmatpush1.bf16.msra.mxu0 0
      %416 = vmatprep.subr.bf16.mxu0 0
      %417 = vmatpush1.bf16.msra.mxu0 0
      %418 = vmatprep.subr.bf16.mxu0 0
      %419 = vmatpush1.bf16.msra.mxu0 0
      %420 = vmatprep.subr.bf16.mxu0 0
      %421 = vmatpush1.bf16.msra.mxu0 0
      %422 = vmatprep.subr.bf16.mxu0 0
      %423 = vmatpush1.bf16.msra.mxu0 0
      %424 = vmatprep.subr.bf16.mxu0 0
      %425 = vmatpush1.bf16.msra.mxu0 0
      %426 = vmatprep.subr.bf16.mxu0 0
      %427 = vmatpush1.bf16.msra.mxu0 0
      %428 = vmatprep.subr.bf16.mxu0 0
      %429 = vmatpush1.bf16.msra.mxu0 0
      %430 = vmatprep.subr.bf16.mxu0 0
      %431 = vmatpush1.bf16.msra.mxu0 0
      %432 = vmatprep.subr.bf16.mxu0 0
      %433 = vmatpush1.bf16.msra.mxu0 0
      %434 = vmatprep.mubr.bf16.mxu0 0
      %435 = vmatmul.mubr.bf16.gmra.mrb[0].mxu0 %v400
      %v436 = vpop.f32.mrb[0].mxu0
      %v437 = vadd.f32 0.0, %v436
      %v438 = vpop.f32.mrb[0].mxu0
      %v439 = vpop.f32.mrb[0].mxu0
      %v440 = vadd.f32 0.0, %v439
      %v441 = vpop.f32.mrb[0].mxu0
      %442 = vdwg.mxu0
      %v443 = vpack.c.bf16 %v440, %v437
      %v444 = vld [vmem:[%s3] sm:$0xff]
      %v445 = vld [vmem:[%s3 + $0x8] sm:$0xff]
      %v446 = vld [vmem:[%s3 + $0x10] sm:$0xff]
      %v447 = vld [vmem:[%s3 + $0x18] sm:$0xff]
      %v448 = vld [vmem:[%s3 + $0x20] sm:$0xff]
      %v449 = vld [vmem:[%s3 + $0x28] sm:$0xff]
      %v450 = vld [vmem:[%s3 + $0x30] sm:$0xff]
      %v451 = vld [vmem:[%s3 + $0x38] sm:$0xff]
      %v452 = vld [vmem:[%s3 + $0x40] sm:$0xff]
      %v453 = vld [vmem:[%s3 + $0x48] sm:$0xff]
      %v454 = vld [vmem:[%s3 + $0x50] sm:$0xff]
      %v455 = vld [vmem:[%s3 + $0x58] sm:$0xff]
      %v456 = vld [vmem:[%s4] sm:$0x3f]
      %v458 = vlaneseq
      %v459 = vshrl.u32 %v458, 7
      %v460 = vsub.s32 0, %v459
      %v461 = vrot.slane %v456, %v460
      %v462 = vlaneseq
      %v463 = vshrl.u32 %v462, 7
      %v464 = vsub.s32 1, %v463
      %v465 = vrot.slane %v456, %v464
      %v466 = vlaneseq
      %v467 = vshrl.u32 %v466, 7
      %v468 = vsub.s32 2, %v467
      %v469 = vrot.slane %v456, %v468
      %v470 = vlaneseq
      %v471 = vshrl.u32 %v470, 7
      %v472 = vsub.s32 3, %v471
      %v473 = vrot.slane %v456, %v472
      %v474 = vlaneseq
      %v475 = vshrl.u32 %v474, 7
      %v476 = vsub.s32 4, %v475
      %v477 = vrot.slane %v456, %v476
      %v478 = vlaneseq
      %v479 = vshrl.u32 %v478, 7
      %v480 = vsub.s32 5, %v479
      %v481 = vrot.slane %v456, %v480
      %v500 = vunpack.c.l.b16 %v444
      %v501 = vunpack.c.h.b16 %v444
      %v502 = vunpack.c.l.b16 %v445
      %v503 = vunpack.c.h.b16 %v445
      %v504 = vunpack.c.l.b16 %v446
      %v505 = vunpack.c.h.b16 %v446
      %v506 = vunpack.c.l.b16 %v447
      %v507 = vunpack.c.h.b16 %v447
      %v508 = vunpack.c.l.b16 %v448
      %v509 = vunpack.c.h.b16 %v448
      %v510 = vunpack.c.l.b16 %v449
      %v511 = vunpack.c.h.b16 %v449
      %v512 = vunpack.c.l.b16 %v450
      %v513 = vunpack.c.h.b16 %v450
      %v514 = vunpack.c.l.b16 %v451
      %v515 = vunpack.c.h.b16 %v451
      %v516 = vunpack.c.l.b16 %v452
      %v517 = vunpack.c.h.b16 %v452
      %v518 = vunpack.c.l.b16 %v453
      %v519 = vunpack.c.h.b16 %v453
      %v520 = vunpack.c.l.b16 %v454
      %v521 = vunpack.c.h.b16 %v454
      %v522 = vunpack.c.l.b16 %v455
      %v523 = vunpack.c.h.b16 %v455
      %v524 = vpack.c.b16 %v506, %v500
      %v525 = vpack.c.b16 %v507, %v501
      %v526 = vpack.c.b16 %v508, %v502
      %v527 = vpack.c.b16 %v509, %v503
      %v528 = vpack.c.b16 %v510, %v504
      %v529 = vpack.c.b16 %v511, %v505
      %v530 = vpack.c.b16 %v518, %v512
      %v531 = vpack.c.b16 %v519, %v513
      %v532 = vpack.c.b16 %v520, %v514
      %v533 = vpack.c.b16 %v521, %v515
      %v534 = vpack.c.b16 %v522, %v516
      %v535 = vpack.c.b16 %v523, %v517
      %vm548 = vcmask 261120
      %v550 = vsel %vm548, %v443, 0
      %552 = vmatprep.subr.bf16.mxu0 %v525
      %553 = vmatpush1.bf16.msra.mxu0 %v524
      %554 = vmatprep.subr.bf16.mxu0 %v531
      %555 = vmatpush1.bf16.msra.mxu0 %v530
      %556 = vmatprep.subr.bf16.mxu0 0
      %557 = vmatpush1.bf16.msra.mxu0 0
      %558 = vmatprep.subr.bf16.mxu0 0
      %559 = vmatpush1.bf16.msra.mxu0 0
      %560 = vmatprep.subr.bf16.mxu0 0
      %561 = vmatpush1.bf16.msra.mxu0 0
      %562 = vmatprep.subr.bf16.mxu0 0
      %563 = vmatpush1.bf16.msra.mxu0 0
      %564 = vmatprep.subr.bf16.mxu0 0
      %565 = vmatpush1.bf16.msra.mxu0 0
      %566 = vmatprep.subr.bf16.mxu0 0
      %567 = vmatpush1.bf16.msra.mxu0 0
      %568 = vmatprep.subr.bf16.mxu0 0
      %569 = vmatpush1.bf16.msra.mxu0 0
      %570 = vmatprep.subr.bf16.mxu0 0
      %571 = vmatpush1.bf16.msra.mxu0 0
      %572 = vmatprep.subr.bf16.mxu0 0
      %573 = vmatpush1.bf16.msra.mxu0 0
      %574 = vmatprep.subr.bf16.mxu0 0
      %575 = vmatpush1.bf16.msra.mxu0 0
      %576 = vmatprep.subr.bf16.mxu0 0
      %577 = vmatpush1.bf16.msra.mxu0 0
      %578 = vmatprep.subr.bf16.mxu0 0
      %579 = vmatpush1.bf16.msra.mxu0 0
      %580 = vmatprep.subr.bf16.mxu0 0
      %581 = vmatpush1.bf16.msra.mxu0 0
      %582 = vmatprep.subr.bf16.mxu0 0
      %583 = vmatpush1.bf16.msra.mxu0 0
      %584 = vmatprep.mubr.bf16.mxu0 0
      %585 = vmatmul.mubr.bf16.gmra.mrb[0].mxu0 %v550
      %v586 = vpop.f32.mrb[0].mxu0
      %v587 = vadd.f32 %v461, %v586
      %v588 = vpop.f32.mrb[0].mxu0
      %v589 = vadd.f32 %v465, %v588
      %v590 = vpop.f32.mrb[0].mxu0
      %v591 = vadd.f32 %v461, %v590
      %v592 = vpop.f32.mrb[0].mxu0
      %v593 = vadd.f32 %v465, %v592
      %594 = vdwg.mxu0
      %595 = vmatprep.subr.bf16.mxu0 %v527
      %596 = vmatpush1.bf16.msra.mxu0 %v526
      %597 = vmatprep.subr.bf16.mxu0 %v533
      %598 = vmatpush1.bf16.msra.mxu0 %v532
      %599 = vmatprep.subr.bf16.mxu0 0
      %600 = vmatpush1.bf16.msra.mxu0 0
      %601 = vmatprep.subr.bf16.mxu0 0
      %602 = vmatpush1.bf16.msra.mxu0 0
      %603 = vmatprep.subr.bf16.mxu0 0
      %604 = vmatpush1.bf16.msra.mxu0 0
      %605 = vmatprep.subr.bf16.mxu0 0
      %606 = vmatpush1.bf16.msra.mxu0 0
      %607 = vmatprep.subr.bf16.mxu0 0
      %608 = vmatpush1.bf16.msra.mxu0 0
      %609 = vmatprep.subr.bf16.mxu0 0
      %610 = vmatpush1.bf16.msra.mxu0 0
      %611 = vmatprep.subr.bf16.mxu0 0
      %612 = vmatpush1.bf16.msra.mxu0 0
      %613 = vmatprep.subr.bf16.mxu0 0
      %614 = vmatpush1.bf16.msra.mxu0 0
      %615 = vmatprep.subr.bf16.mxu0 0
      %616 = vmatpush1.bf16.msra.mxu0 0
      %617 = vmatprep.subr.bf16.mxu0 0
      %618 = vmatpush1.bf16.msra.mxu0 0
      %619 = vmatprep.subr.bf16.mxu0 0
      %620 = vmatpush1.bf16.msra.mxu0 0
      %621 = vmatprep.subr.bf16.mxu0 0
      %622 = vmatpush1.bf16.msra.mxu0 0
      %623 = vmatprep.subr.bf16.mxu0 0
      %624 = vmatpush1.bf16.msra.mxu0 0
      %625 = vmatprep.subr.bf16.mxu0 0
      %626 = vmatpush1.bf16.msra.mxu0 0
      %627 = vmatprep.mubr.bf16.mxu0 0
      %628 = vmatmul.mubr.bf16.gmra.mrb[0].mxu0 %v550
      %v629 = vpop.f32.mrb[0].mxu0
      %v630 = vadd.f32 %v469, %v629
      %v631 = vpop.f32.mrb[0].mxu0
      %v632 = vadd.f32 %v473, %v631
      %v633 = vpop.f32.mrb[0].mxu0
      %v634 = vadd.f32 %v469, %v633
      %v635 = vpop.f32.mrb[0].mxu0
      %v636 = vadd.f32 %v473, %v635
      %637 = vdwg.mxu0
      %638 = vmatprep.subr.bf16.mxu0 %v529
      %639 = vmatpush1.bf16.msra.mxu0 %v528
      %640 = vmatprep.subr.bf16.mxu0 %v535
      %641 = vmatpush1.bf16.msra.mxu0 %v534
      %642 = vmatprep.subr.bf16.mxu0 0
      %643 = vmatpush1.bf16.msra.mxu0 0
      %644 = vmatprep.subr.bf16.mxu0 0
      %645 = vmatpush1.bf16.msra.mxu0 0
      %646 = vmatprep.subr.bf16.mxu0 0
      %647 = vmatpush1.bf16.msra.mxu0 0
      %648 = vmatprep.subr.bf16.mxu0 0
      %649 = vmatpush1.bf16.msra.mxu0 0
      %650 = vmatprep.subr.bf16.mxu0 0
      %651 = vmatpush1.bf16.msra.mxu0 0
      %652 = vmatprep.subr.bf16.mxu0 0
      %653 = vmatpush1.bf16.msra.mxu0 0
      %654 = vmatprep.subr.bf16.mxu0 0
      %655 = vmatpush1.bf16.msra.mxu0 0
      %656 = vmatprep.subr.bf16.mxu0 0
      %657 = vmatpush1.bf16.msra.mxu0 0
      %658 = vmatprep.subr.bf16.mxu0 0
      %659 = vmatpush1.bf16.msra.mxu0 0
      %660 = vmatprep.subr.bf16.mxu0 0
      %661 = vmatpush1.bf16.msra.mxu0 0
      %662 = vmatprep.subr.bf16.mxu0 0
      %663 = vmatpush1.bf16.msra.mxu0 0
      %664 = vmatprep.subr.bf16.mxu0 0
      %665 = vmatpush1.bf16.msra.mxu0 0
      %666 = vmatprep.subr.bf16.mxu0 0
      %667 = vmatpush1.bf16.msra.mxu0 0
      %668 = vmatprep.subr.bf16.mxu0 0
      %669 = vmatpush1.bf16.msra.mxu0 0
      %670 = vmatprep.mubr.bf16.mxu0 0
      %671 = vmatmul.mubr.bf16.gmra.mrb[0].mxu0 %v550
      %v672 = vpop.f32.mrb[0].mxu0
      %v673 = vadd.f32 %v477, %v672
      %v674 = vpop.f32.mrb[0].mxu0
      %v675 = vadd.f32 %v481, %v674
      %v676 = vpop.f32.mrb[0].mxu0
      %v677 = vadd.f32 %v477, %v676
      %v678 = vpop.f32.mrb[0].mxu0
      %v679 = vadd.f32 %v481, %v678
      %680 = vdwg.mxu0
      %v681 = vpack.c.bf16 %v384, %v383
      %v682 = vld [vmem:[%s5] sm:$0xff]
      %v683 = vld [vmem:[%s5 + $0x8] sm:$0xff]
      %v684 = vld [vmem:[%s5 + $0x10] sm:$0xff]
      %v685 = vld [vmem:[%s5 + $0x18] sm:$0xff]
      %v686 = vld [vmem:[%s5 + $0x20] sm:$0xff]
      %v687 = vld [vmem:[%s5 + $0x28] sm:$0xff]
      %v688 = vld [vmem:[%s5 + $0x30] sm:$0xff]
      %v689 = vld [vmem:[%s5 + $0x38] sm:$0xff]
      %v698 = vunpack.c.l.b16 %v682
      %v699 = vunpack.c.h.b16 %v682
      %v700 = vunpack.c.l.b16 %v683
      %v701 = vunpack.c.h.b16 %v683
      %v702 = vunpack.c.l.b16 %v684
      %v703 = vunpack.c.h.b16 %v684
      %v704 = vunpack.c.l.b16 %v685
      %v705 = vunpack.c.h.b16 %v685
      %v706 = vunpack.c.l.b16 %v686
      %v707 = vunpack.c.h.b16 %v686
      %v708 = vunpack.c.l.b16 %v687
      %v709 = vunpack.c.h.b16 %v687
      %v710 = vunpack.c.l.b16 %v688
      %v711 = vunpack.c.h.b16 %v688
      %v712 = vunpack.c.l.b16 %v689
      %v713 = vunpack.c.h.b16 %v689
      %v714 = vpack.c.b16 %v702, %v698
      %v715 = vpack.c.b16 %v703, %v699
      %v716 = vpack.c.b16 %v704, %v700
      %v717 = vpack.c.b16 %v705, %v701
      %v718 = vpack.c.b16 %v710, %v706
      %v719 = vpack.c.b16 %v711, %v707
      %v720 = vpack.c.b16 %v712, %v708
      %v721 = vpack.c.b16 %v713, %v709
      %v731 = vsel %vm548, %v681, 0
      %733 = vmatprep.subr.bf16.mxu0 %v715
      %734 = vmatpush1.bf16.msra.mxu0 %v714
      %735 = vmatprep.subr.bf16.mxu0 %v719
      %736 = vmatpush1.bf16.msra.mxu0 %v718
      %737 = vmatprep.subr.bf16.mxu0 0
      %738 = vmatpush1.bf16.msra.mxu0 0
      %739 = vmatprep.subr.bf16.mxu0 0
      %740 = vmatpush1.bf16.msra.mxu0 0
      %741 = vmatprep.subr.bf16.mxu0 0
      %742 = vmatpush1.bf16.msra.mxu0 0
      %743 = vmatprep.subr.bf16.mxu0 0
      %744 = vmatpush1.bf16.msra.mxu0 0
      %745 = vmatprep.subr.bf16.mxu0 0
      %746 = vmatpush1.bf16.msra.mxu0 0
      %747 = vmatprep.subr.bf16.mxu0 0
      %748 = vmatpush1.bf16.msra.mxu0 0
      %749 = vmatprep.subr.bf16.mxu0 0
      %750 = vmatpush1.bf16.msra.mxu0 0
      %751 = vmatprep.subr.bf16.mxu0 0
      %752 = vmatpush1.bf16.msra.mxu0 0
      %753 = vmatprep.subr.bf16.mxu0 0
      %754 = vmatpush1.bf16.msra.mxu0 0
      %755 = vmatprep.subr.bf16.mxu0 0
      %756 = vmatpush1.bf16.msra.mxu0 0
      %757 = vmatprep.subr.bf16.mxu0 0
      %758 = vmatpush1.bf16.msra.mxu0 0
      %759 = vmatprep.subr.bf16.mxu0 0
      %760 = vmatpush1.bf16.msra.mxu0 0
      %761 = vmatprep.subr.bf16.mxu0 0
      %762 = vmatpush1.bf16.msra.mxu0 0
      %763 = vmatprep.subr.bf16.mxu0 0
      %764 = vmatpush1.bf16.msra.mxu0 0
      %765 = vmatprep.mubr.bf16.mxu0 0
      %766 = vmatmul.mubr.bf16.gmra.mrb[0].mxu0 %v731
      %v767 = vpop.f32.mrb[0].mxu0
      %v768 = vadd.f32 0.0, %v767
      %v769 = vpop.f32.mrb[0].mxu0
      %v770 = vadd.f32 0.0, %v769
      %v771 = vpop.f32.mrb[0].mxu0
      %v772 = vadd.f32 0.0, %v771
      %v773 = vpop.f32.mrb[0].mxu0
      %v774 = vadd.f32 0.0, %v773
      %775 = vdwg.mxu0
      %776 = vmatprep.subr.bf16.mxu0 %v717
      %777 = vmatpush1.bf16.msra.mxu0 %v716
      %778 = vmatprep.subr.bf16.mxu0 %v721
      %779 = vmatpush1.bf16.msra.mxu0 %v720
      %780 = vmatprep.subr.bf16.mxu0 0
      %781 = vmatpush1.bf16.msra.mxu0 0
      %782 = vmatprep.subr.bf16.mxu0 0
      %783 = vmatpush1.bf16.msra.mxu0 0
      %784 = vmatprep.subr.bf16.mxu0 0
      %785 = vmatpush1.bf16.msra.mxu0 0
      %786 = vmatprep.subr.bf16.mxu0 0
      %787 = vmatpush1.bf16.msra.mxu0 0
      %788 = vmatprep.subr.bf16.mxu0 0
      %789 = vmatpush1.bf16.msra.mxu0 0
      %790 = vmatprep.subr.bf16.mxu0 0
      %791 = vmatpush1.bf16.msra.mxu0 0
      %792 = vmatprep.subr.bf16.mxu0 0
      %793 = vmatpush1.bf16.msra.mxu0 0
      %794 = vmatprep.subr.bf16.mxu0 0
      %795 = vmatpush1.bf16.msra.mxu0 0
      %796 = vmatprep.subr.bf16.mxu0 0
      %797 = vmatpush1.bf16.msra.mxu0 0
      %798 = vmatprep.subr.bf16.mxu0 0
      %799 = vmatpush1.bf16.msra.mxu0 0
      %800 = vmatprep.subr.bf16.mxu0 0
      %801 = vmatpush1.bf16.msra.mxu0 0
      %802 = vmatprep.subr.bf16.mxu0 0
      %803 = vmatpush1.bf16.msra.mxu0 0
      %804 = vmatprep.subr.bf16.mxu0 0
      %805 = vmatpush1.bf16.msra.mxu0 0
      %806 = vmatprep.subr.bf16.mxu0 0
      %807 = vmatpush1.bf16.msra.mxu0 0
      %808 = vmatprep.mubr.bf16.mxu0 0
      %809 = vmatmul.mubr.bf16.gmra.mrb[0].mxu0 %v731
      %v810 = vpop.f32.mrb[0].mxu0
      %v811 = vadd.f32 0.0, %v810
      %v812 = vpop.f32.mrb[0].mxu0
      %v813 = vadd.f32 0.0, %v812
      %v814 = vpop.f32.mrb[0].mxu0
      %v815 = vadd.f32 0.0, %v814
      %v816 = vpop.f32.mrb[0].mxu0
      %v817 = vadd.f32 0.0, %v816
      %818 = vdwg.mxu0
      %821 = vrot.lane.b32.xlu0 %v383, 32
      %v822 = vpop.permute.xlu0 %821
      %823 = vrot.lane.b32.xlu0 %v384, 32
      %v824 = vpop.permute.xlu0 %823
      %827 = vrot.lane.b32.xlu0 %v383, 64
      %v828 = vpop.permute.xlu0 %827
      %829 = vrot.lane.b32.xlu0 %v384, 64
      %v830 = vpop.permute.xlu0 %829
      %833 = vrot.lane.b32.xlu0 %v383, 96
      %v834 = vpop.permute.xlu0 %833
      %835 = vrot.lane.b32.xlu0 %v384, 96
      %v836 = vpop.permute.xlu0 %835
      %v839 = vsel %vm548, %v383, %v822
      %v840 = vsel %vm548, %v384, %v824
      %vm841 = vcmask 523264
      %v842 = vsel %vm841, %v839, %v828
      %v843 = vsel %vm841, %v840, %v830
      %vm844 = vcmask 785408
      %v845 = vsel %vm844, %v842, %v834
      %v846 = vsel %vm844, %v843, %v836
      %v847 = vadd.f32 %v587, %v768
      %v848 = vadd.f32 %v589, %v770
      %v849 = vadd.f32 %v591, %v772
      %v850 = vadd.f32 %v593, %v774
      %v851 = vxor.u32 %v847, 2147483648
      %v852 = vxor.u32 %v848, 2147483648
      %v853 = vxor.u32 %v849, 2147483648
      %v854 = vxor.u32 %v850, 2147483648
      %v855 = vmul.f32 %v851, 1.442695
      %v856 = vpow.pop %v855
      %v857 = vmul.f32 %v852, 1.442695
      %v858 = vpow.pop %v857
      %v859 = vmul.f32 %v853, 1.442695
      %v860 = vpow.pop %v859
      %v861 = vmul.f32 %v854, 1.442695
      %v862 = vpow.pop %v861
      %v863 = vadd.f32 %v856, 1.0
      %v864 = vadd.f32 %v858, 1.0
      %v865 = vadd.f32 %v860, 1.0
      %v866 = vadd.f32 %v862, 1.0
      %v867 = vrcp.pop %v863
      %v868 = vmul.f32 1.0, %v867
      %v869 = vrcp.pop %v864
      %v870 = vmul.f32 1.0, %v869
      %v871 = vrcp.pop %v865
      %v872 = vmul.f32 1.0, %v871
      %v873 = vrcp.pop %v866
      %v874 = vmul.f32 1.0, %v873
      %v875 = vadd.f32 %v630, %v811
      %v876 = vadd.f32 %v632, %v813
      %v877 = vadd.f32 %v634, %v815
      %v878 = vadd.f32 %v636, %v817
      %v879 = vxor.u32 %v875, 2147483648
      %v880 = vxor.u32 %v876, 2147483648
      %v881 = vxor.u32 %v877, 2147483648
      %v882 = vxor.u32 %v878, 2147483648
      %v883 = vmul.f32 %v879, 1.442695
      %v884 = vpow.pop %v883
      %v885 = vmul.f32 %v880, 1.442695
      %v886 = vpow.pop %v885
      %v887 = vmul.f32 %v881, 1.442695
      %v888 = vpow.pop %v887
      %v889 = vmul.f32 %v882, 1.442695
      %v890 = vpow.pop %v889
      %v891 = vadd.f32 %v884, 1.0
      %v892 = vadd.f32 %v886, 1.0
      %v893 = vadd.f32 %v888, 1.0
      %v894 = vadd.f32 %v890, 1.0
      %v895 = vrcp.pop %v891
      %v896 = vmul.f32 1.0, %v895
      %v897 = vrcp.pop %v892
      %v898 = vmul.f32 1.0, %v897
      %v899 = vrcp.pop %v893
      %v900 = vmul.f32 1.0, %v899
      %v901 = vrcp.pop %v894
      %v902 = vmul.f32 1.0, %v901
      %v903 = vmul.f32 %v845, %v896
      %v904 = vmul.f32 %v845, %v898
      %v905 = vmul.f32 %v846, %v900
      %v906 = vmul.f32 %v846, %v902
      %v907 = vpack.c.bf16 %v905, %v903
      %v908 = vpack.c.bf16 %v906, %v904
      %v909 = vld [vmem:[%s6] sm:$0xff]
      %v910 = vld [vmem:[%s6 + $0x8] sm:$0xff]
      %v911 = vld [vmem:[%s6 + $0x10] sm:$0xff]
      %v912 = vld [vmem:[%s6 + $0x18] sm:$0xff]
      %v913 = vld [vmem:[%s6 + $0x20] sm:$0xff]
      %v914 = vld [vmem:[%s6 + $0x28] sm:$0xff]
      %v915 = vld [vmem:[%s6 + $0x30] sm:$0xff]
      %v916 = vld [vmem:[%s6 + $0x38] sm:$0xff]
      %v917 = vld [vmem:[%s6 + $0x40] sm:$0xff]
      %v918 = vld [vmem:[%s6 + $0x48] sm:$0xff]
      %v919 = vld [vmem:[%s6 + $0x50] sm:$0xff]
      %v920 = vld [vmem:[%s6 + $0x58] sm:$0xff]
      %v921 = vld [vmem:[%s6 + $0x60] sm:$0xff]
      %v922 = vld [vmem:[%s6 + $0x68] sm:$0xff]
      %v923 = vld [vmem:[%s6 + $0x70] sm:$0xff]
      %v924 = vld [vmem:[%s6 + $0x78] sm:$0xff]
      %v925 = vld [vmem:[%s6 + $0x80] sm:$0xff]
      %v926 = vld [vmem:[%s6 + $0x88] sm:$0xff]
      %v927 = vld [vmem:[%s6 + $0x90] sm:$0xff]
      %v928 = vld [vmem:[%s6 + $0x98] sm:$0xff]
      %v929 = vld [vmem:[%s6 + $0xa0] sm:$0xff]
      %v930 = vld [vmem:[%s6 + $0xa8] sm:$0xff]
      %v931 = vld [vmem:[%s6 + $0xb0] sm:$0xff]
      %v932 = vld [vmem:[%s6 + $0xb8] sm:$0xff]
      %v933 = vld [vmem:[%s6 + $0xc0] sm:$0xff]
      %v934 = vld [vmem:[%s6 + $0xc8] sm:$0xff]
      %v935 = vld [vmem:[%s6 + $0xd0] sm:$0xff]
      %v936 = vld [vmem:[%s6 + $0xd8] sm:$0xff]
      %v937 = vld [vmem:[%s6 + $0xe0] sm:$0xff]
      %v938 = vld [vmem:[%s6 + $0xe8] sm:$0xff]
      %v939 = vld [vmem:[%s6 + $0xf0] sm:$0xff]
      %v940 = vld [vmem:[%s6 + $0xf8] sm:$0xff]
      %v973 = vunpack.c.l.b16 %v909
      %v974 = vunpack.c.h.b16 %v909
      %v975 = vunpack.c.l.b16 %v910
      %v976 = vunpack.c.h.b16 %v910
      %v977 = vunpack.c.l.b16 %v911
      %v978 = vunpack.c.h.b16 %v911
      %v979 = vunpack.c.l.b16 %v912
      %v980 = vunpack.c.h.b16 %v912
      %v981 = vunpack.c.l.b16 %v913
      %v982 = vunpack.c.h.b16 %v913
      %v983 = vunpack.c.l.b16 %v914
      %v984 = vunpack.c.h.b16 %v914
      %v985 = vunpack.c.l.b16 %v915
      %v986 = vunpack.c.h.b16 %v915
      %v987 = vunpack.c.l.b16 %v916
      %v988 = vunpack.c.h.b16 %v916
      %v989 = vunpack.c.l.b16 %v917
      %v990 = vunpack.c.h.b16 %v917
      %v991 = vunpack.c.l.b16 %v918
      %v992 = vunpack.c.h.b16 %v918
      %v993 = vunpack.c.l.b16 %v919
      %v994 = vunpack.c.h.b16 %v919
      %v995 = vunpack.c.l.b16 %v920
      %v996 = vunpack.c.h.b16 %v920
      %v997 = vunpack.c.l.b16 %v921
      %v998 = vunpack.c.h.b16 %v921
      %v999 = vunpack.c.l.b16 %v922
      %v1000 = vunpack.c.h.b16 %v922
      %v1001 = vunpack.c.l.b16 %v923
      %v1002 = vunpack.c.h.b16 %v923
      %v1003 = vunpack.c.l.b16 %v924
      %v1004 = vunpack.c.h.b16 %v924
      %v1005 = vunpack.c.l.b16 %v925
      %v1006 = vunpack.c.h.b16 %v925
      %v1007 = vunpack.c.l.b16 %v926
      %v1008 = vunpack.c.h.b16 %v926
      %v1009 = vunpack.c.l.b16 %v927
      %v1010 = vunpack.c.h.b16 %v927
      %v1011 = vunpack.c.l.b16 %v928
      %v1012 = vunpack.c.h.b16 %v928
      %v1013 = vunpack.c.l.b16 %v929
      %v1014 = vunpack.c.h.b16 %v929
      %v1015 = vunpack.c.l.b16 %v930
      %v1016 = vunpack.c.h.b16 %v930
      %v1017 = vunpack.c.l.b16 %v931
      %v1018 = vunpack.c.h.b16 %v931
      %v1019 = vunpack.c.l.b16 %v932
      %v1020 = vunpack.c.h.b16 %v932
      %v1021 = vunpack.c.l.b16 %v933
      %v1022 = vunpack.c.h.b16 %v933
      %v1023 = vunpack.c.l.b16 %v934
      %v1024 = vunpack.c.h.b16 %v934
      %v1025 = vunpack.c.l.b16 %v935
      %v1026 = vunpack.c.h.b16 %v935
      %v1027 = vunpack.c.l.b16 %v936
      %v1028 = vunpack.c.h.b16 %v936
      %v1029 = vunpack.c.l.b16 %v937
      %v1030 = vunpack.c.h.b16 %v937
      %v1031 = vunpack.c.l.b16 %v938
      %v1032 = vunpack.c.h.b16 %v938
      %v1033 = vunpack.c.l.b16 %v939
      %v1034 = vunpack.c.h.b16 %v939
      %v1035 = vunpack.c.l.b16 %v940
      %v1036 = vunpack.c.h.b16 %v940
      %v1037 = vpack.c.b16 %v975, %v973
      %v1038 = vpack.c.b16 %v976, %v974
      %v1039 = vpack.c.b16 %v979, %v977
      %v1040 = vpack.c.b16 %v980, %v978
      %v1041 = vpack.c.b16 %v983, %v981
      %v1042 = vpack.c.b16 %v984, %v982
      %v1043 = vpack.c.b16 %v987, %v985
      %v1044 = vpack.c.b16 %v988, %v986
      %v1045 = vpack.c.b16 %v991, %v989
      %v1046 = vpack.c.b16 %v992, %v990
      %v1047 = vpack.c.b16 %v995, %v993
      %v1048 = vpack.c.b16 %v996, %v994
      %v1049 = vpack.c.b16 %v999, %v997
      %v1050 = vpack.c.b16 %v1000, %v998
      %v1051 = vpack.c.b16 %v1003, %v1001
      %v1052 = vpack.c.b16 %v1004, %v1002
      %v1053 = vpack.c.b16 %v1007, %v1005
      %v1054 = vpack.c.b16 %v1008, %v1006
      %v1055 = vpack.c.b16 %v1011, %v1009
      %v1056 = vpack.c.b16 %v1012, %v1010
      %v1057 = vpack.c.b16 %v1015, %v1013
      %v1058 = vpack.c.b16 %v1016, %v1014
      %v1059 = vpack.c.b16 %v1019, %v1017
      %v1060 = vpack.c.b16 %v1020, %v1018
      %v1061 = vpack.c.b16 %v1023, %v1021
      %v1062 = vpack.c.b16 %v1024, %v1022
      %v1063 = vpack.c.b16 %v1027, %v1025
      %v1064 = vpack.c.b16 %v1028, %v1026
      %v1065 = vpack.c.b16 %v1031, %v1029
      %v1066 = vpack.c.b16 %v1032, %v1030
      %v1067 = vpack.c.b16 %v1035, %v1033
      %v1068 = vpack.c.b16 %v1036, %v1034
      %1101 = vmatprep.subr.bf16.mxu0 %v1038
      %1102 = vmatpush1.bf16.msra.mxu0 %v1037
      %1103 = vmatprep.subr.bf16.mxu0 %v1040
      %1104 = vmatpush1.bf16.msra.mxu0 %v1039
      %1105 = vmatprep.subr.bf16.mxu0 %v1042
      %1106 = vmatpush1.bf16.msra.mxu0 %v1041
      %1107 = vmatprep.subr.bf16.mxu0 %v1044
      %1108 = vmatpush1.bf16.msra.mxu0 %v1043
      %1109 = vmatprep.subr.bf16.mxu0 %v1046
      %1110 = vmatpush1.bf16.msra.mxu0 %v1045
      %1111 = vmatprep.subr.bf16.mxu0 %v1048
      %1112 = vmatpush1.bf16.msra.mxu0 %v1047
      %1113 = vmatprep.subr.bf16.mxu0 %v1050
      %1114 = vmatpush1.bf16.msra.mxu0 %v1049
      %1115 = vmatprep.subr.bf16.mxu0 %v1052
      %1116 = vmatpush1.bf16.msra.mxu0 %v1051
      %1117 = vmatprep.subr.bf16.mxu0 %v1054
      %1118 = vmatpush1.bf16.msra.mxu0 %v1053
      %1119 = vmatprep.subr.bf16.mxu0 %v1056
      %1120 = vmatpush1.bf16.msra.mxu0 %v1055
      %1121 = vmatprep.subr.bf16.mxu0 %v1058
      %1122 = vmatpush1.bf16.msra.mxu0 %v1057
      %1123 = vmatprep.subr.bf16.mxu0 %v1060
      %1124 = vmatpush1.bf16.msra.mxu0 %v1059
      %1125 = vmatprep.subr.bf16.mxu0 %v1062
      %1126 = vmatpush1.bf16.msra.mxu0 %v1061
      %1127 = vmatprep.subr.bf16.mxu0 %v1064
      %1128 = vmatpush1.bf16.msra.mxu0 %v1063
      %1129 = vmatprep.subr.bf16.mxu0 %v1066
      %1130 = vmatpush1.bf16.msra.mxu0 %v1065
      %1131 = vmatprep.subr.bf16.mxu0 %v1068
      %1132 = vmatpush1.bf16.msra.mxu0 %v1067
      %1133 = vmatprep.mubr.bf16.mxu0 %v908
      %1134 = vmatmul.mubr.bf16.gmra.mrb[0].mxu0 %v907
      %v1135 = vpop.f32.mrb[0].mxu0
      %v1136 = vadd.f32 0.0, %v1135
      %v1137 = vpop.f32.mrb[0].mxu0
      %v1138 = vadd.f32 0.0, %v1137
      %v1139 = vpop.f32.mrb[0].mxu0
      %v1140 = vadd.f32 0.0, %v1139
      %v1141 = vpop.f32.mrb[0].mxu0
      %v1142 = vadd.f32 0.0, %v1141
      %1143 = vdwg.mxu0
      %v1144 = vadd.f32 %v673, %v1136
      %v1145 = vadd.f32 %v675, %v1138
      %v1146 = vadd.f32 %v677, %v1140
      %v1147 = vadd.f32 %v679, %v1142
      %v1148 = vtanh.pop %v1144
      %v1149 = vtanh.pop %v1145
      %v1150 = vtanh.pop %v1146
      %v1151 = vtanh.pop %v1147
      %v1152 = vmul.f32 %v868, %v845
      %v1153 = vmul.f32 %v870, %v845
      %v1154 = vmul.f32 %v872, %v846
      %v1155 = vmul.f32 %v874, %v846
      %v1156 = vsub.f32 1.0, %v868
      %v1157 = vsub.f32 1.0, %v870
      %v1158 = vsub.f32 1.0, %v872
      %v1159 = vsub.f32 1.0, %v874
      %v1160 = vmul.f32 %v1156, %v1148
      %v1161 = vmul.f32 %v1157, %v1149
      %v1162 = vmul.f32 %v1158, %v1150
      %v1163 = vmul.f32 %v1159, %v1151
      %v1164 = vadd.f32 %v1152, %v1160
      %v1165 = vadd.f32 %v1153, %v1161
      %v1166 = vadd.f32 %v1154, %v1162
      %v1167 = vadd.f32 %v1155, %v1163
      %v1168 = vpack.c.bf16 %v1166, %v1164
      %v1169 = vpack.c.bf16 %v1167, %v1165
      %v1170 = vld [vmem:[%s7] sm:$0xf]
      %v1171 = vld [vmem:[%s7 + $0x4] sm:$0xf]
      %v1172 = vld [vmem:[%s7 + $0x8] sm:$0xf]
      %v1173 = vld [vmem:[%s7 + $0xc] sm:$0xf]
      %v1174 = vld [vmem:[%s7 + $0x10] sm:$0xf]
      %v1175 = vld [vmem:[%s7 + $0x14] sm:$0xf]
      %v1176 = vld [vmem:[%s7 + $0x18] sm:$0xf]
      %v1177 = vld [vmem:[%s7 + $0x1c] sm:$0xf]
      %v1178 = vld [vmem:[%s7 + $0x20] sm:$0xf]
      %v1179 = vld [vmem:[%s7 + $0x24] sm:$0xf]
      %v1180 = vld [vmem:[%s7 + $0x28] sm:$0xf]
      %v1181 = vld [vmem:[%s7 + $0x2c] sm:$0xf]
      %v1182 = vld [vmem:[%s7 + $0x30] sm:$0xf]
      %v1183 = vld [vmem:[%s7 + $0x34] sm:$0xf]
      %v1184 = vld [vmem:[%s7 + $0x38] sm:$0xf]
      %v1185 = vld [vmem:[%s7 + $0x3c] sm:$0xf]
      %v1186 = vld [vmem:[%s7 + $0x40] sm:$0xf]
      %v1187 = vld [vmem:[%s7 + $0x44] sm:$0xf]
      %v1188 = vld [vmem:[%s7 + $0x48] sm:$0xf]
      %v1189 = vld [vmem:[%s7 + $0x4c] sm:$0xf]
      %v1190 = vld [vmem:[%s7 + $0x50] sm:$0xf]
      %v1191 = vld [vmem:[%s7 + $0x54] sm:$0xf]
      %v1192 = vld [vmem:[%s7 + $0x58] sm:$0xf]
      %v1193 = vld [vmem:[%s7 + $0x5c] sm:$0xf]
      %v1194 = vld [vmem:[%s7 + $0x60] sm:$0xf]
      %v1195 = vld [vmem:[%s7 + $0x64] sm:$0xf]
      %v1196 = vld [vmem:[%s7 + $0x68] sm:$0xf]
      %v1197 = vld [vmem:[%s7 + $0x6c] sm:$0xf]
      %v1198 = vld [vmem:[%s7 + $0x70] sm:$0xf]
      %v1199 = vld [vmem:[%s7 + $0x74] sm:$0xf]
      %v1200 = vld [vmem:[%s7 + $0x78] sm:$0xf]
      %v1201 = vld [vmem:[%s7 + $0x7c] sm:$0xf]
      %v1234 = vunpack.c.l.b16 %v1170
      %v1235 = vunpack.c.l.b16 %v1171
      %v1236 = vunpack.c.l.b16 %v1172
      %v1237 = vunpack.c.l.b16 %v1173
      %v1238 = vunpack.c.l.b16 %v1174
      %v1239 = vunpack.c.l.b16 %v1175
      %v1240 = vunpack.c.l.b16 %v1176
      %v1241 = vunpack.c.l.b16 %v1177
      %v1242 = vunpack.c.l.b16 %v1178
      %v1243 = vunpack.c.l.b16 %v1179
      %v1244 = vunpack.c.l.b16 %v1180
      %v1245 = vunpack.c.l.b16 %v1181
      %v1246 = vunpack.c.l.b16 %v1182
      %v1247 = vunpack.c.l.b16 %v1183
      %v1248 = vunpack.c.l.b16 %v1184
      %v1249 = vunpack.c.l.b16 %v1185
      %v1250 = vunpack.c.l.b16 %v1186
      %v1251 = vunpack.c.l.b16 %v1187
      %v1252 = vunpack.c.l.b16 %v1188
      %v1253 = vunpack.c.l.b16 %v1189
      %v1254 = vunpack.c.l.b16 %v1190
      %v1255 = vunpack.c.l.b16 %v1191
      %v1256 = vunpack.c.l.b16 %v1192
      %v1257 = vunpack.c.l.b16 %v1193
      %v1258 = vunpack.c.l.b16 %v1194
      %v1259 = vunpack.c.l.b16 %v1195
      %v1260 = vunpack.c.l.b16 %v1196
      %v1261 = vunpack.c.l.b16 %v1197
      %v1262 = vunpack.c.l.b16 %v1198
      %v1263 = vunpack.c.l.b16 %v1199
      %v1264 = vunpack.c.l.b16 %v1200
      %v1265 = vunpack.c.l.b16 %v1201
      %v1266 = vpack.c.b16 %v1235, %v1234
      %v1267 = vpack.c.b16 %v1237, %v1236
      %v1268 = vpack.c.b16 %v1239, %v1238
      %v1269 = vpack.c.b16 %v1241, %v1240
      %v1270 = vpack.c.b16 %v1243, %v1242
      %v1271 = vpack.c.b16 %v1245, %v1244
      %v1272 = vpack.c.b16 %v1247, %v1246
      %v1273 = vpack.c.b16 %v1249, %v1248
      %v1274 = vpack.c.b16 %v1251, %v1250
      %v1275 = vpack.c.b16 %v1253, %v1252
      %v1276 = vpack.c.b16 %v1255, %v1254
      %v1277 = vpack.c.b16 %v1257, %v1256
      %v1278 = vpack.c.b16 %v1259, %v1258
      %v1279 = vpack.c.b16 %v1261, %v1260
      %v1280 = vpack.c.b16 %v1263, %v1262
      %v1281 = vpack.c.b16 %v1265, %v1264
      %1298 = vmatprep.subr.bf16.mxu0 0
      %1299 = vmatpush1.bf16.msra.mxu0 %v1266
      %1300 = vmatprep.subr.bf16.mxu0 0
      %1301 = vmatpush1.bf16.msra.mxu0 %v1267
      %1302 = vmatprep.subr.bf16.mxu0 0
      %1303 = vmatpush1.bf16.msra.mxu0 %v1268
      %1304 = vmatprep.subr.bf16.mxu0 0
      %1305 = vmatpush1.bf16.msra.mxu0 %v1269
      %1306 = vmatprep.subr.bf16.mxu0 0
      %1307 = vmatpush1.bf16.msra.mxu0 %v1270
      %1308 = vmatprep.subr.bf16.mxu0 0
      %1309 = vmatpush1.bf16.msra.mxu0 %v1271
      %1310 = vmatprep.subr.bf16.mxu0 0
      %1311 = vmatpush1.bf16.msra.mxu0 %v1272
      %1312 = vmatprep.subr.bf16.mxu0 0
      %1313 = vmatpush1.bf16.msra.mxu0 %v1273
      %1314 = vmatprep.subr.bf16.mxu0 0
      %1315 = vmatpush1.bf16.msra.mxu0 %v1274
      %1316 = vmatprep.subr.bf16.mxu0 0
      %1317 = vmatpush1.bf16.msra.mxu0 %v1275
      %1318 = vmatprep.subr.bf16.mxu0 0
      %1319 = vmatpush1.bf16.msra.mxu0 %v1276
      %1320 = vmatprep.subr.bf16.mxu0 0
      %1321 = vmatpush1.bf16.msra.mxu0 %v1277
      %1322 = vmatprep.subr.bf16.mxu0 0
      %1323 = vmatpush1.bf16.msra.mxu0 %v1278
      %1324 = vmatprep.subr.bf16.mxu0 0
      %1325 = vmatpush1.bf16.msra.mxu0 %v1279
      %1326 = vmatprep.subr.bf16.mxu0 0
      %1327 = vmatpush1.bf16.msra.mxu0 %v1280
      %1328 = vmatprep.subr.bf16.mxu0 0
      %1329 = vmatpush1.bf16.msra.mxu0 %v1281
      %1330 = vmatprep.mubr.bf16.mxu0 %v1169
      %1331 = vmatmul.mubr.bf16.gmra.mrb[0].mxu0 %v1168
      %v1332 = vpop.f32.mrb[0].mxu0
      %v1333 = vadd.f32 0.0, %v1332
      %v1334 = vpop.f32.mrb[0].mxu0
      %v1335 = vpop.f32.mrb[0].mxu0
      %v1336 = vadd.f32 0.0, %v1335
      %v1337 = vpop.f32.mrb[0].mxu0
      %1338 = vdwg.mxu0
      %v1339 = vmax.f32 %v1333, 0.0
      %v1340 = vmax.f32 %v1336, 0.0
      %v1341 = vpack.c.bf16 %v1340, %v1339
      %v1342 = vld [vmem:[%s8] sm:$0xf]
      %v1343 = vld [vmem:[%s8 + $0x4] sm:$0xf]
      %v1344 = vld [vmem:[%s8 + $0x8] sm:$0xf]
      %v1345 = vld [vmem:[%s8 + $0xc] sm:$0xf]
      %v1346 = vld [vmem:[%s9] sm:$0x1]
      %v1348 = vlaneseq
      %v1349 = vshrl.u32 %v1348, 7
      %v1350 = vsub.s32 0, %v1349
      %v1351 = vrot.slane %v1346, %v1350
      %v1357 = vunpack.c.l.b16 %v1342
      %v1358 = vunpack.c.l.b16 %v1343
      %v1359 = vunpack.c.l.b16 %v1344
      %v1360 = vunpack.c.l.b16 %v1345
      %v1361 = vpack.c.b16 %v1358, %v1357
      %v1362 = vpack.c.b16 %v1360, %v1359
      %v1366 = vsel %vm548, %v1341, 0
      %1368 = vmatprep.subr.bf16.mxu0 0
      %1369 = vmatpush1.bf16.msra.mxu0 %v1361
      %1370 = vmatprep.subr.bf16.mxu0 0
      %1371 = vmatpush1.bf16.msra.mxu0 %v1362
      %1372 = vmatprep.subr.bf16.mxu0 0
      %1373 = vmatpush1.bf16.msra.mxu0 0
      %1374 = vmatprep.subr.bf16.mxu0 0
      %1375 = vmatpush1.bf16.msra.mxu0 0
      %1376 = vmatprep.subr.bf16.mxu0 0
      %1377 = vmatpush1.bf16.msra.mxu0 0
      %1378 = vmatprep.subr.bf16.mxu0 0
      %1379 = vmatpush1.bf16.msra.mxu0 0
      %1380 = vmatprep.subr.bf16.mxu0 0
      %1381 = vmatpush1.bf16.msra.mxu0 0
      %1382 = vmatprep.subr.bf16.mxu0 0
      %1383 = vmatpush1.bf16.msra.mxu0 0
      %1384 = vmatprep.subr.bf16.mxu0 0
      %1385 = vmatpush1.bf16.msra.mxu0 0
      %1386 = vmatprep.subr.bf16.mxu0 0
      %1387 = vmatpush1.bf16.msra.mxu0 0
      %1388 = vmatprep.subr.bf16.mxu0 0
      %1389 = vmatpush1.bf16.msra.mxu0 0
      %1390 = vmatprep.subr.bf16.mxu0 0
      %1391 = vmatpush1.bf16.msra.mxu0 0
      %1392 = vmatprep.subr.bf16.mxu0 0
      %1393 = vmatpush1.bf16.msra.mxu0 0
      %1394 = vmatprep.subr.bf16.mxu0 0
      %1395 = vmatpush1.bf16.msra.mxu0 0
      %1396 = vmatprep.subr.bf16.mxu0 0
      %1397 = vmatpush1.bf16.msra.mxu0 0
      %1398 = vmatprep.subr.bf16.mxu0 0
      %1399 = vmatpush1.bf16.msra.mxu0 0
      %1400 = vmatprep.mubr.bf16.mxu0 0
      %1401 = vmatmul.mubr.bf16.gmra.mrb[0].mxu0 %v1366
      %v1402 = vpop.f32.mrb[0].mxu0
      %v1403 = vadd.f32 %v1351, %v1402
      %v1404 = vpop.f32.mrb[0].mxu0
      %v1405 = vpop.f32.mrb[0].mxu0
      %v1406 = vadd.f32 %v1351, %v1405
      %v1407 = vpop.f32.mrb[0].mxu0
      %1408 = vdwg.mxu0
      %vm1409 = vcmask 64512
      %1410 = vst.msk [vmem:[%s379] sm:$0xff] %vm1409, %v1403
      %1411 = vst.msk [vmem:[%s379 + $0x8] sm:$0xff] %vm1409, %v1406
      %p1412 = scmp.lt.s32.totalorder %s21, 1
      %s1413 = scalar_select %p1412, %s21, 1
      %s1414 = smul.addr %s1413, 2
      %s1415 = smul.addr %s1414, 8
      %s1416 = scalar_lea.vmem %s10, %s1415
      // Predicated region
      $region61: #{temporal_gnn_forward.1} parent=59 // pred_check
        %p1417 = pneg %p259
      $region62: #{temporal_gnn_forward.1} parent=59 // pred_check_branch
        %1419 = sbr.rel (%p1417) target = $region64
      $region63: #{temporal_gnn_forward.1} parent=59 // pred_region
        _
      $region64: #{temporal_gnn_forward.1} parent=59 // pred_fallthru
        _
    $region60: #{temporal_gnn_forward.1} parent=5 // pred_fallthru
      _
    %p1420 = scmp.le.s32.totalorder 2, %s16
    // Predicated region
    $region65: #{temporal_gnn_forward.1} parent=5 // pred_check
      %p1421 = pneg %p1420
    $region66: #{temporal_gnn_forward.1} parent=5 // pred_check_branch
      %1423 = sbr.rel (%p1421) target = $region68
    $region67: #{temporal_gnn_forward.1} parent=5 // pred_region
      %s1424 = ssub.s32 %s16, 2
      // Predicated region
      $region69: #{temporal_gnn_forward.1} parent=67 // pred_check
        %p1425 = pneg %p265
      $region70: #{temporal_gnn_forward.1} parent=67 // pred_check_branch
        %1427 = sbr.rel (%p1425) target = $region72
      $region71: #{temporal_gnn_forward.1} parent=67 // pred_region
        %p1428 = scmp.lt.s32.totalorder %s22, 1
        %s1429 = scalar_select %p1428, %s22, 1
        %s1430 = smul.addr %s1429, 2
        %s1431 = smul.addr %s1430, 8
        %s1432 = scalar_lea.vmem %s10, %s1431
      $region72: #{temporal_gnn_forward.1} parent=67 // pred_fallthru
        _
    $region68: #{temporal_gnn_forward.1} parent=5 // pred_fallthru
      _
  $region6: #{temporal_gnn_forward.1} parent=0 // loop_footer
    %s20 = sadd.s32 1, %s16
  $region7: #{temporal_gnn_forward.1} parent=0 // loop_footer_branch
    %15 = sbr.rel target = $region3
  $region8: #{temporal_gnn_forward.1} parent=0 // loop_exit
    _

</llo_original>
